<compile_context>
chip_gen: v6e
topology: v6e:2x2x1
jax: 0.10.0
libtpu: 0.0.40
codegen_flags: <defaults>
</compile_context>

<pallas_src>
import functools
import math

import jax
import jax.numpy as jnp
from jax import lax
from jax.experimental import pallas as pl
from jax.experimental.pallas import tpu as pltpu


# ----------------------------- Pallas kernels -----------------------------

def _attn_block_kernel(*refs, nhead, scale, eps, has_pos):
    """Fused QKV proj + multi-head attention + out_proj + LayerNorm1.

    Processes one batch element per grid step. Block shapes: activations
    (1, S, D); weights are fully resident (same block index every step, so no
    re-DMA across the grid).
    """
    if has_pos:
        (x_ref, p_ref, wqk_ref, bqk_ref, wv_ref, bv_ref,
         wo_ref, bo_ref, g1_ref, beta1_ref, o_ref) = refs
    else:
        (x_ref, wqk_ref, bqk_ref, wv_ref, bv_ref,
         wo_ref, bo_ref, g1_ref, beta1_ref, o_ref) = refs

    bf16 = jnp.bfloat16
    x = x_ref[0]                               # (S, D) f32  — value input
    if has_pos:
        xp = x + p_ref[0]                      # (S, D) f32  — q/k input
    else:
        xp = x
    s_len, d = x.shape
    hd = d // nhead

    # ---- packed Q/K projection and V projection (bf16 MXU, f32 accumulate) --
    qk = jnp.dot(xp.astype(bf16), wqk_ref[...],
                 preferred_element_type=jnp.float32) + bqk_ref[...]    # (S, 2D)
    v = jnp.dot(x.astype(bf16), wv_ref[...],
                preferred_element_type=jnp.float32) + bv_ref[...]      # (S, D)
    q = qk[:, :d] * scale                 # PyTorch MHA scales q before QK^T
    k = qk[:, d:]

    # ---- per-head softmax(QK^T) V, heads re-packed lane-dense into (S, D) --
    head_outs = []
    for h in range(nhead):                # static unrolled loop over heads
        qh = q[:, h * hd:(h + 1) * hd].astype(bf16)
        kh = k[:, h * hd:(h + 1) * hd].astype(bf16)
        vh = v[:, h * hd:(h + 1) * hd].astype(bf16)
        s = lax.dot_general(qh, kh, (((1,), (1,)), ((), ())),
                            preferred_element_type=jnp.float32)        # (S, S)
        m = jnp.max(s, axis=-1, keepdims=True)                         # f32
        e = jnp.exp(s - m)
        p = e * pl.reciprocal(jnp.sum(e, axis=-1, keepdims=True), approx=True)
        head_outs.append(jnp.dot(p.astype(bf16), vh,
                                 preferred_element_type=jnp.float32))  # (S, hd)
    attn = jnp.concatenate(head_outs, axis=-1)                         # (S, D)

    # ---- out_proj + LayerNorm1 (reference quirk: norm of src2 only) --------
    src2 = jnp.dot(attn.astype(bf16), wo_ref[...],
                   preferred_element_type=jnp.float32) + bo_ref[...]   # (S, D)
    mean = jnp.mean(src2, axis=-1, keepdims=True)
    xc = src2 - mean
    var = jnp.mean(xc * xc, axis=-1, keepdims=True)
    inv = lax.rsqrt(var + eps)
    o_ref[0] = (xc * inv * g1_ref[...] + beta1_ref[...]).astype(o_ref.dtype)


def _ffn_block_kernel(x_ref, w1_ref, b1_ref, w2_ref, b2_ref,
                      g2_ref, beta2_ref, o_ref, *, eps):
    """Fused linear1 + ReLU + linear2 + residual + LayerNorm2 on a row tile."""
    bf16 = jnp.bfloat16
    x = x_ref[...]                                                   # (tm, D) f32
    h = jnp.dot(x.astype(bf16), w1_ref[...],
                preferred_element_type=jnp.float32) + b1_ref[...]    # (tm, Dff)
    h = jnp.maximum(h, 0.0)                                          # ReLU
    ff = jnp.dot(h.astype(bf16), w2_ref[...],
                 preferred_element_type=jnp.float32) + b2_ref[...]   # (tm, D)
    y = x + ff                                # residual (dropout2 = identity)
    mean = jnp.mean(y, axis=-1, keepdims=True)
    yc = y - mean
    var = jnp.mean(yc * yc, axis=-1, keepdims=True)
    inv = lax.rsqrt(var + eps)
    o_ref[...] = (yc * inv * g2_ref[...] + beta2_ref[...]).astype(o_ref.dtype)


# ----------------------------- Layer wrapper -----------------------------

def _row_tile(n, max_tile=512):
    """Row tile: divides n, multiple of 8 (f32 sublane), <= max_tile, and
    leaves >= 2 grid steps when possible so v7x can shard across both TCs."""
    for t in range(min(n // 2, max_tile), 7, -1):
        if n % t == 0 and t % 8 == 0:
            return t
    return n


def transformer_encoder_layer(src, params, nhead, pos=None, eps=1e-5):
    """forward_post of TransformerEncoderLayer.  src/pos: (S, B, D) f32."""
    S, B, D = src.shape
    assert D % nhead == 0
    hd = D // nhead
    scale = 1.0 / math.sqrt(hd)
    Dff = params["w1"].shape[1]
    N = B * S
    f32, bf16 = jnp.float32, jnp.bfloat16

    # ---- pack / cast weights (bf16 MXU operands; biases & LN params f32) ----
    wqk = jnp.concatenate([params["wq"], params["wk"]], axis=1).astype(bf16)
    bqk = jnp.concatenate([params["bq"], params["bk"]]).reshape(1, 2 * D).astype(f32)
    wv = params["wv"].astype(bf16)
    bv = params["bv"].reshape(1, D).astype(f32)
    wo = params["wo"].astype(bf16)
    bo = params["bo"].reshape(1, D).astype(f32)
    w1 = params["w1"].astype(bf16)
    b1 = params["bias1"].reshape(1, Dff).astype(f32)
    w2 = params["w2"].astype(bf16)
    b2 = params["bias2"].reshape(1, D).astype(f32)
    g1 = params["g1"].reshape(1, D).astype(f32)
    beta1 = params["beta1"].reshape(1, D).astype(f32)
    g2 = params["g2"].reshape(1, D).astype(f32)
    beta2 = params["beta2"].reshape(1, D).astype(f32)

    # ---- (S,B,D) -> (B,S,D): contiguous, lane-dense per-batch slabs ---------
    x_bsd = jnp.transpose(src, (1, 0, 2)).astype(f32)
    has_pos = pos is not None

    slab = pl.BlockSpec((1, S, D), lambda b: (b, 0, 0))
    full2d = lambda r, c: pl.BlockSpec((r, c), lambda b: (0, 0))

    inputs = [x_bsd]
    in_specs = [slab]
    if has_pos:
        inputs.append(jnp.transpose(pos, (1, 0, 2)).astype(f32))
        in_specs.append(slab)
    inputs += [wqk, bqk, wv, bv, wo, bo, g1, beta1]
    in_specs += [full2d(D, 2 * D), full2d(1, 2 * D), full2d(D, D), full2d(1, D),
                 full2d(D, D), full2d(1, D), full2d(1, D), full2d(1, D)]

    attn_flops = 8 * B * S * D * D + 4 * B * S * S * D
    attn_bytes = ((3 if has_pos else 2) * B * S * D * 4   # activations in+out
                  + 8 * D * D * 2                          # bf16 weights
                  + 24 * D)                                # biases / LN params

    srcn_bsd = pl.pallas_call(
        functools.partial(_attn_block_kernel, nhead=nhead, scale=scale,
                          eps=eps, has_pos=has_pos),
        out_shape=jax.ShapeDtypeStruct((B, S, D), f32),
        grid=(B,),
        in_specs=in_specs,
        out_specs=slab,
        compiler_params=pltpu.CompilerParams(
            dimension_semantics=("parallel",),
            vmem_limit_bytes=32 * 1024 * 1024),
        cost_estimate=pl.CostEstimate(
            flops=attn_flops, transcendentals=B * nhead * S * S,
            bytes_accessed=attn_bytes),
    )(*inputs)

    # ---- fused FFN + residual + LayerNorm2 over rows of (B*S, D) ------------
    # TODO(synk): for large dim_feedforward, K-tile w1/w2 with an f32 VMEM
    # accumulator instead of keeping both weight matrices fully resident.
    srcn = srcn_bsd.reshape(N, D)
    tm = _row_tile(N)
    ffn_flops = 4 * N * D * Dff
    ffn_bytes = 2 * N * D * 4 + 2 * D * Dff * 2 + (Dff + 3 * D) * 4

    out = pl.pallas_call(
        functools.partial(_ffn_block_kernel, eps=eps),
        out_shape=jax.ShapeDtypeStruct((N, D), f32),
        grid=(N // tm,),
        in_specs=[
            pl.BlockSpec((tm, D), lambda i: (i, 0)),
            pl.BlockSpec((D, Dff), lambda i: (0, 0)),
            pl.BlockSpec((1, Dff), lambda i: (0, 0)),
            pl.BlockSpec((Dff, D), lambda i: (0, 0)),
            pl.BlockSpec((1, D), lambda i: (0, 0)),
            pl.BlockSpec((1, D), lambda i: (0, 0)),
            pl.BlockSpec((1, D), lambda i: (0, 0)),
        ],
        out_specs=pl.BlockSpec((tm, D), lambda i: (i, 0)),
        compiler_params=pltpu.CompilerParams(
            dimension_semantics=("parallel",),
            vmem_limit_bytes=32 * 1024 * 1024),
        cost_estimate=pl.CostEstimate(
            flops=ffn_flops, transcendentals=N, bytes_accessed=ffn_bytes),
    )(srcn, w1, b1, w2, b2, g2, beta2)

    return out.reshape(B, S, D).transpose(1, 0, 2)         # back to (S, B, D)


# ----------------------------- Reference (pure JAX, f32) -----------------------------

def reference_layer(src, params, nhead, pos=None, eps=1e-5):
    S, B, D = src.shape
    hd = D // nhead
    scale = 1.0 / math.sqrt(hd)
    qin = src if pos is None else src + pos

    q = jnp.einsum('sbd,de->sbe', qin, params['wq']) + params['bq']
    k = jnp.einsum('sbd,de->sbe', qin, params['wk']) + params['bk']
    v = jnp.einsum('sbd,de->sbe', src, params['wv']) + params['bv']

    def heads(t):
        return t.reshape(S, B, nhead, hd).transpose(1, 2, 0, 3)   # (B,H,S,hd)

    qh, kh, vh = heads(q), heads(k), heads(v)
    s = jnp.einsum('bhqd,bhkd->bhqk', qh, kh) * scale
    p = jax.nn.softmax(s, axis=-1)
    o = jnp.einsum('bhqk,bhkd->bhqd', p, vh)
    attn = o.transpose(2, 0, 1, 3).reshape(S, B, D)
    src2 = jnp.einsum('sbd,de->sbe', attn, params['wo']) + params['bo']

    def ln(x, g, b):
        m = x.mean(-1, keepdims=True)
        var = ((x - m) ** 2).mean(-1, keepdims=True)
        return (x - m) / jnp.sqrt(var + eps) * g + b

    srcn = ln(src2, params['g1'], params['beta1'])        # reference quirk
    h = jax.nn.relu(jnp.einsum('sbd,df->sbf', srcn, params['w1']) + params['bias1'])
    ff = jnp.einsum('sbf,fd->sbd', h, params['w2']) + params['bias2']
    return ln(srcn + ff, params['g2'], params['beta2'])


# ----------------------------- Param init -----------------------------

def make_params(key, d_model, nhead, dim_feedforward):
    ks = jax.random.split(key, 12)
    n = lambda k, shape: (0.02 * jax.random.normal(k, shape)).astype(jnp.float32)
    # weights stored as (in, out), i.e. already transposed vs. PyTorch (out, in)
    return {
        "wq": n(ks[0], (d_model, d_model)), "bq": n(ks[1], (d_model,)),
        "wk": n(ks[2], (d_model, d_model)), "bk": n(ks[3], (d_model,)),
        "wv": n(ks[4], (d_model, d_model)), "bv": n(ks[5], (d_model,)),
        "wo": n(ks[6], (d_model, d_model)), "bo": n(ks[7], (d_model,)),
        "w1": n(ks[8], (d_model, dim_feedforward)), "bias1": n(ks[9], (dim_feedforward,)),
        "w2": n(ks[10], (dim_feedforward, d_model)), "bias2": n(ks[11], (d_model,)),
        "g1": jnp.ones((d_model,), jnp.float32), "beta1": jnp.zeros((d_model,), jnp.float32),
        "g2": jnp.ones((d_model,), jnp.float32), "beta2": jnp.zeros((d_model,), jnp.float32),
    }


if __name__ == "__main__":
    S, B, d_model, nhead, dim_ff = 8, 2, 32, 4, 64

    key = jax.random.PRNGKey(0)
    k_src, k_pos, k_par = jax.random.split(key, 3)
    src = jax.random.normal(k_src, (S, B, d_model), dtype=jnp.float32)
    pos = jax.random.normal(k_pos, (S, B, d_model), dtype=jnp.float32)
    params = make_params(k_par, d_model, nhead, dim_ff)

    fn = jax.jit(functools.partial(transformer_encoder_layer, nhead=nhead))
    out = jax.block_until_ready(fn(src, params, pos=pos))

    ref = reference_layer(src, params, nhead, pos=pos)
    assert out.shape == (S, B, d_model)
    assert jnp.isfinite(out).all()
    max_err = float(jnp.max(jnp.abs(out - ref)))
    assert max_err < 1e-1, f"max abs err vs f32 reference: {max_err}"
    print("KERNEL_OK")
</pallas_src>

<mosaic_0001>
module attributes {stable_mosaic.version = 11 : i64} {
  func.func @_ffn_block_kernel(%arg0: i32, %arg1: memref<8x32xf32, #tpu.memory_space<vmem>>, %arg2: memref<32x64xbf16, #tpu.memory_space<vmem>>, %arg3: memref<1x64xf32, #tpu.memory_space<vmem>>, %arg4: memref<64x32xbf16, #tpu.memory_space<vmem>>, %arg5: memref<1x32xf32, #tpu.memory_space<vmem>>, %arg6: memref<1x32xf32, #tpu.memory_space<vmem>>, %arg7: memref<1x32xf32, #tpu.memory_space<vmem>>, %arg8: memref<8x32xf32, #tpu.memory_space<vmem>>) attributes {dimension_semantics = [#tpu.dimension_semantics<parallel>], iteration_bounds = array<i64: 2>, scalar_prefetch = 0 : i64, scratch_operands = 0 : i64, tpu.core_type = #tpu.core_type<tc>, window_params = [{transform_indices = @transform_0, window_bounds = array<i64: 8, 32>}, {pipeline_mode = #tpu.pipeline_mode<synchronous>, transform_indices = @transform_1, window_bounds = array<i64: 32, 64>}, {pipeline_mode = #tpu.pipeline_mode<synchronous>, transform_indices = @transform_2, window_bounds = array<i64: 1, 64>}, {pipeline_mode = #tpu.pipeline_mode<synchronous>, transform_indices = @transform_3, window_bounds = array<i64: 64, 32>}, {pipeline_mode = #tpu.pipeline_mode<synchronous>, transform_indices = @transform_4, window_bounds = array<i64: 1, 32>}, {pipeline_mode = #tpu.pipeline_mode<synchronous>, transform_indices = @transform_5, window_bounds = array<i64: 1, 32>}, {pipeline_mode = #tpu.pipeline_mode<synchronous>, transform_indices = @transform_6, window_bounds = array<i64: 1, 32>}, {transform_indices = @transform_7, window_bounds = array<i64: 8, 32>}]} {
    %c0 = arith.constant 0 : index
    %c0_0 = arith.constant 0 : index
    %0 = vector.load %arg1[%c0, %c0_0] : memref<8x32xf32, #tpu.memory_space<vmem>>, vector<8x32xf32>
    %1 = arith.truncf %0 : vector<8x32xf32> to vector<8x32xbf16>
    %c0_1 = arith.constant 0 : index
    %c0_2 = arith.constant 0 : index
    %2 = vector.load %arg2[%c0_1, %c0_2] : memref<32x64xbf16, #tpu.memory_space<vmem>>, vector<32x64xbf16>
    %cst = arith.constant dense<0.000000e+00> : vector<8x64xf32>
    %3 = tpu.matmul %1, %2, %cst {dimension_numbers = #tpu.dot_dimension_numbers<[1], [0], [0], [1], [0, 0, 1, 1], [], []>} : vector<8x32xbf16>, vector<32x64xbf16>, vector<8x64xf32> -> vector<8x64xf32>
    %c0_3 = arith.constant 0 : index
    %c0_4 = arith.constant 0 : index
    %4 = vector.load %arg3[%c0_3, %c0_4] : memref<1x64xf32, #tpu.memory_space<vmem>>, vector<1x64xf32>
    %5 = vector.broadcast %4 : vector<1x64xf32> to vector<8x64xf32>
    %6 = arith.addf %3, %5 : vector<8x64xf32>
    %cst_5 = arith.constant 0.000000e+00 : f32
    %7 = vector.broadcast %cst_5 : f32 to vector<8x64xf32>
    %8 = arith.maximumf %6, %7 : vector<8x64xf32>
    %9 = arith.truncf %8 : vector<8x64xf32> to vector<8x64xbf16>
    %c0_6 = arith.constant 0 : index
    %c0_7 = arith.constant 0 : index
    %10 = vector.load %arg4[%c0_6, %c0_7] : memref<64x32xbf16, #tpu.memory_space<vmem>>, vector<64x32xbf16>
    %cst_8 = arith.constant dense<0.000000e+00> : vector<8x32xf32>
    %11 = tpu.matmul %9, %10, %cst_8 {dimension_numbers = #tpu.dot_dimension_numbers<[1], [0], [0], [1], [0, 0, 1, 1], [], []>} : vector<8x64xbf16>, vector<64x32xbf16>, vector<8x32xf32> -> vector<8x32xf32>
    %c0_9 = arith.constant 0 : index
    %c0_10 = arith.constant 0 : index
    %12 = vector.load %arg5[%c0_9, %c0_10] : memref<1x32xf32, #tpu.memory_space<vmem>>, vector<1x32xf32>
    %13 = vector.broadcast %12 : vector<1x32xf32> to vector<8x32xf32>
    %14 = arith.addf %11, %13 : vector<8x32xf32>
    %15 = arith.addf %0, %14 : vector<8x32xf32>
    %cst_11 = arith.constant dense<0.000000e+00> : vector<8xf32>
    %16 = vector.multi_reduction <add>, %15, %cst_11 [1] : vector<8x32xf32> to vector<8xf32>
    %17 = vector.shape_cast %16 : vector<8xf32> to vector<8x1xf32>
    %cst_12 = arith.constant 3.200000e+01 : f32
    %18 = vector.broadcast %cst_12 : f32 to vector<8x1xf32>
    %19 = arith.divf %17, %18 : vector<8x1xf32>
    %20 = vector.broadcast %19 : vector<8x1xf32> to vector<8x32xf32>
    %21 = arith.subf %15, %20 : vector<8x32xf32>
    %22 = arith.mulf %21, %21 : vector<8x32xf32>
    %cst_13 = arith.constant dense<0.000000e+00> : vector<8xf32>
    %23 = vector.multi_reduction <add>, %22, %cst_13 [1] : vector<8x32xf32> to vector<8xf32>
    %24 = vector.shape_cast %23 : vector<8xf32> to vector<8x1xf32>
    %cst_14 = arith.constant 3.200000e+01 : f32
    %25 = vector.broadcast %cst_14 : f32 to vector<8x1xf32>
    %26 = arith.divf %24, %25 : vector<8x1xf32>
    %cst_15 = arith.constant 9.99999974E-6 : f32
    %27 = vector.broadcast %cst_15 : f32 to vector<8x1xf32>
    %28 = arith.addf %26, %27 : vector<8x1xf32>
    %29 = math.rsqrt %28 : vector<8x1xf32>
    %30 = vector.broadcast %29 : vector<8x1xf32> to vector<8x32xf32>
    %31 = arith.mulf %21, %30 : vector<8x32xf32>
    %c0_16 = arith.constant 0 : index
    %c0_17 = arith.constant 0 : index
    %32 = vector.load %arg6[%c0_16, %c0_17] : memref<1x32xf32, #tpu.memory_space<vmem>>, vector<1x32xf32>
    %33 = vector.broadcast %32 : vector<1x32xf32> to vector<8x32xf32>
    %34 = arith.mulf %31, %33 : vector<8x32xf32>
    %c0_18 = arith.constant 0 : index
    %c0_19 = arith.constant 0 : index
    %35 = vector.load %arg7[%c0_18, %c0_19] : memref<1x32xf32, #tpu.memory_space<vmem>>, vector<1x32xf32>
    %36 = vector.broadcast %35 : vector<1x32xf32> to vector<8x32xf32>
    %37 = arith.addf %34, %36 : vector<8x32xf32>
    %c0_20 = arith.constant 0 : index
    %c0_21 = arith.constant 0 : index
    %38 = vector.load %arg8[%c0_20, %c0_21] : memref<8x32xf32, #tpu.memory_space<vmem>>, vector<8x32xf32>
    tpu.vector_store %arg8[%c0_20, %c0_21], %37 {strides = array<i32>} : memref<8x32xf32, #tpu.memory_space<vmem>>, vector<8x32xf32>,
    return
  }
  func.func @transform_0(%arg0: i32) -> (i32, i32) {
    %c0_i32 = arith.constant 0 : i32
    %c0_i32_0 = arith.constant 0 : i32
    return %arg0, %c0_i32 : i32, i32
  }
  func.func @transform_1(%arg0: i32) -> (i32, i32) {
    %c0_i32 = arith.constant 0 : i32
    %c0_i32_0 = arith.constant 0 : i32
    %c0_i32_1 = arith.constant 0 : i32
    return %c0_i32, %c0_i32_0 : i32, i32
  }
  func.func @transform_2(%arg0: i32) -> (i32, i32) {
    %c0_i32 = arith.constant 0 : i32
    %c0_i32_0 = arith.constant 0 : i32
    %c0_i32_1 = arith.constant 0 : i32
    return %c0_i32, %c0_i32_0 : i32, i32
  }
  func.func @transform_3(%arg0: i32) -> (i32, i32) {
    %c0_i32 = arith.constant 0 : i32
    %c0_i32_0 = arith.constant 0 : i32
    %c0_i32_1 = arith.constant 0 : i32
    return %c0_i32, %c0_i32_0 : i32, i32
  }
  func.func @transform_4(%arg0: i32) -> (i32, i32) {
    %c0_i32 = arith.constant 0 : i32
    %c0_i32_0 = arith.constant 0 : i32
    %c0_i32_1 = arith.constant 0 : i32
    return %c0_i32, %c0_i32_0 : i32, i32
  }
  func.func @transform_5(%arg0: i32) -> (i32, i32) {
    %c0_i32 = arith.constant 0 : i32
    %c0_i32_0 = arith.constant 0 : i32
    %c0_i32_1 = arith.constant 0 : i32
    return %c0_i32, %c0_i32_0 : i32, i32
  }
  func.func @transform_6(%arg0: i32) -> (i32, i32) {
    %c0_i32 = arith.constant 0 : i32
    %c0_i32_0 = arith.constant 0 : i32
    %c0_i32_1 = arith.constant 0 : i32
    return %c0_i32, %c0_i32_0 : i32, i32
  }
  func.func @transform_7(%arg0: i32) -> (i32, i32) {
    %c0_i32 = arith.constant 0 : i32
    %c0_i32_0 = arith.constant 0 : i32
    return %arg0, %c0_i32 : i32, i32
  }
}

module attributes {stable_mosaic.version = 11 : i64} {
  func.func @_attn_block_kernel(%arg0: i32, %arg1: memref<1x8x32xf32, #tpu.memory_space<vmem>>, %arg2: memref<1x8x32xf32, #tpu.memory_space<vmem>>, %arg3: memref<32x64xbf16, #tpu.memory_space<vmem>>, %arg4: memref<1x64xf32, #tpu.memory_space<vmem>>, %arg5: memref<32x32xbf16, #tpu.memory_space<vmem>>, %arg6: memref<1x32xf32, #tpu.memory_space<vmem>>, %arg7: memref<32x32xbf16, #tpu.memory_space<vmem>>, %arg8: memref<1x32xf32, #tpu.memory_space<vmem>>, %arg9: memref<1x32xf32, #tpu.memory_space<vmem>>, %arg10: memref<1x32xf32, #tpu.memory_space<vmem>>, %arg11: memref<1x8x32xf32, #tpu.memory_space<vmem>>) attributes {dimension_semantics = [#tpu.dimension_semantics<parallel>], iteration_bounds = array<i64: 2>, scalar_prefetch = 0 : i64, scratch_operands = 0 : i64, tpu.core_type = #tpu.core_type<tc>, window_params = [{transform_indices = @transform_0, window_bounds = array<i64: 1, 8, 32>}, {transform_indices = @transform_1, window_bounds = array<i64: 1, 8, 32>}, {pipeline_mode = #tpu.pipeline_mode<synchronous>, transform_indices = @transform_2, window_bounds = array<i64: 32, 64>}, {pipeline_mode = #tpu.pipeline_mode<synchronous>, transform_indices = @transform_3, window_bounds = array<i64: 1, 64>}, {pipeline_mode = #tpu.pipeline_mode<synchronous>, transform_indices = @transform_4, window_bounds = array<i64: 32, 32>}, {pipeline_mode = #tpu.pipeline_mode<synchronous>, transform_indices = @transform_5, window_bounds = array<i64: 1, 32>}, {pipeline_mode = #tpu.pipeline_mode<synchronous>, transform_indices = @transform_6, window_bounds = array<i64: 32, 32>}, {pipeline_mode = #tpu.pipeline_mode<synchronous>, transform_indices = @transform_7, window_bounds = array<i64: 1, 32>}, {pipeline_mode = #tpu.pipeline_mode<synchronous>, transform_indices = @transform_8, window_bounds = array<i64: 1, 32>}, {pipeline_mode = #tpu.pipeline_mode<synchronous>, transform_indices = @transform_9, window_bounds = array<i64: 1, 32>}, {transform_indices = @transform_10, window_bounds = array<i64: 1, 8, 32>}]} {
    %c0 = arith.constant 0 : index
    %c0_0 = arith.constant 0 : index
    %c0_1 = arith.constant 0 : index
    %0 = vector.load %arg1[%c0, %c0_0, %c0_1] : memref<1x8x32xf32, #tpu.memory_space<vmem>>, vector<1x8x32xf32>
    %1 = vector.shape_cast %0 : vector<1x8x32xf32> to vector<8x32xf32>
    %c0_2 = arith.constant 0 : index
    %c0_3 = arith.constant 0 : index
    %c0_4 = arith.constant 0 : index
    %2 = vector.load %arg2[%c0_2, %c0_3, %c0_4] : memref<1x8x32xf32, #tpu.memory_space<vmem>>, vector<1x8x32xf32>
    %3 = vector.shape_cast %2 : vector<1x8x32xf32> to vector<8x32xf32>
    %4 = arith.addf %1, %3 : vector<8x32xf32>
    %5 = arith.truncf %4 : vector<8x32xf32> to vector<8x32xbf16>
    %c0_5 = arith.constant 0 : index
    %c0_6 = arith.constant 0 : index
    %6 = vector.load %arg3[%c0_5, %c0_6] : memref<32x64xbf16, #tpu.memory_space<vmem>>, vector<32x64xbf16>
    %cst = arith.constant dense<0.000000e+00> : vector<8x64xf32>
    %7 = tpu.matmul %5, %6, %cst {dimension_numbers = #tpu.dot_dimension_numbers<[1], [0], [0], [1], [0, 0, 1, 1], [], []>} : vector<8x32xbf16>, vector<32x64xbf16>, vector<8x64xf32> -> vector<8x64xf32>
    %c0_7 = arith.constant 0 : index
    %c0_8 = arith.constant 0 : index
    %8 = vector.load %arg4[%c0_7, %c0_8] : memref<1x64xf32, #tpu.memory_space<vmem>>, vector<1x64xf32>
    %9 = vector.broadcast %8 : vector<1x64xf32> to vector<8x64xf32>
    %10 = arith.addf %7, %9 : vector<8x64xf32>
    %11 = arith.truncf %1 : vector<8x32xf32> to vector<8x32xbf16>
    %c0_9 = arith.constant 0 : index
    %c0_10 = arith.constant 0 : index
    %12 = vector.load %arg5[%c0_9, %c0_10] : memref<32x32xbf16, #tpu.memory_space<vmem>>, vector<32x32xbf16>
    %cst_11 = arith.constant dense<0.000000e+00> : vector<8x32xf32>
    %13 = tpu.matmul %11, %12, %cst_11 {dimension_numbers = #tpu.dot_dimension_numbers<[1], [0], [0], [1], [0, 0, 1, 1], [], []>} : vector<8x32xbf16>, vector<32x32xbf16>, vector<8x32xf32> -> vector<8x32xf32>
    %c0_12 = arith.constant 0 : index
    %c0_13 = arith.constant 0 : index
    %14 = vector.load %arg6[%c0_12, %c0_13] : memref<1x32xf32, #tpu.memory_space<vmem>>, vector<1x32xf32>
    %15 = vector.broadcast %14 : vector<1x32xf32> to vector<8x32xf32>
    %16 = arith.addf %13, %15 : vector<8x32xf32>
    %17 = vector.extract_strided_slice %10 {offsets = [0, 0], sizes = [8, 32], strides = [1, 1]} : vector<8x64xf32> to vector<8x32xf32>
    %cst_14 = arith.constant 0.353553385 : f32
    %18 = vector.broadcast %cst_14 : f32 to vector<8x32xf32>
    %19 = arith.mulf %17, %18 : vector<8x32xf32>
    %20 = vector.extract_strided_slice %10 {offsets = [0, 32], sizes = [8, 32], strides = [1, 1]} : vector<8x64xf32> to vector<8x32xf32>
    %21 = vector.extract_strided_slice %19 {offsets = [0, 0], sizes = [8, 8], strides = [1, 1]} : vector<8x32xf32> to vector<8x8xf32>
    %22 = arith.truncf %21 : vector<8x8xf32> to vector<8x8xbf16>
    %23 = vector.extract_strided_slice %20 {offsets = [0, 0], sizes = [8, 8], strides = [1, 1]} : vector<8x32xf32> to vector<8x8xf32>
    %24 = arith.truncf %23 : vector<8x8xf32> to vector<8x8xbf16>
    %25 = vector.extract_strided_slice %16 {offsets = [0, 0], sizes = [8, 8], strides = [1, 1]} : vector<8x32xf32> to vector<8x8xf32>
    %26 = arith.truncf %25 : vector<8x8xf32> to vector<8x8xbf16>
    %cst_15 = arith.constant dense<0.000000e+00> : vector<8x8xf32>
    %27 = tpu.matmul %22, %24, %cst_15 {dimension_numbers = #tpu.dot_dimension_numbers<[1], [1], [0], [0], [0, 0, 1, 0], [], []>} : vector<8x8xbf16>, vector<8x8xbf16>, vector<8x8xf32> -> vector<8x8xf32>
    %cst_16 = arith.constant dense<0xFF800000> : vector<8xf32>
    %28 = vector.multi_reduction <maximumf>, %27, %cst_16 [1] : vector<8x8xf32> to vector<8xf32>
    %29 = vector.shape_cast %28 : vector<8xf32> to vector<8x1xf32>
    %30 = vector.broadcast %29 : vector<8x1xf32> to vector<8x8xf32>
    %31 = arith.subf %27, %30 : vector<8x8xf32>
    %32 = math.exp %31 : vector<8x8xf32>
    %cst_17 = arith.constant dense<0.000000e+00> : vector<8xf32>
    %33 = vector.multi_reduction <add>, %32, %cst_17 [1] : vector<8x8xf32> to vector<8xf32>
    %34 = vector.shape_cast %33 : vector<8xf32> to vector<8x1xf32>
    %35 = tpu.reciprocal %34 {approx = true} : vector<8x1xf32> -> vector<8x1xf32>
    %36 = vector.broadcast %35 : vector<8x1xf32> to vector<8x8xf32>
    %37 = arith.mulf %32, %36 : vector<8x8xf32>
    %38 = arith.truncf %37 : vector<8x8xf32> to vector<8x8xbf16>
    %cst_18 = arith.constant dense<0.000000e+00> : vector<8x8xf32>
    %39 = tpu.matmul %38, %26, %cst_18 {dimension_numbers = #tpu.dot_dimension_numbers<[1], [0], [0], [1], [0, 0, 1, 1], [], []>} : vector<8x8xbf16>, vector<8x8xbf16>, vector<8x8xf32> -> vector<8x8xf32>
    %40 = vector.extract_strided_slice %19 {offsets = [0, 8], sizes = [8, 8], strides = [1, 1]} : vector<8x32xf32> to vector<8x8xf32>
    %41 = arith.truncf %40 : vector<8x8xf32> to vector<8x8xbf16>
    %42 = vector.extract_strided_slice %20 {offsets = [0, 8], sizes = [8, 8], strides = [1, 1]} : vector<8x32xf32> to vector<8x8xf32>
    %43 = arith.truncf %42 : vector<8x8xf32> to vector<8x8xbf16>
    %44 = vector.extract_strided_slice %16 {offsets = [0, 8], sizes = [8, 8], strides = [1, 1]} : vector<8x32xf32> to vector<8x8xf32>
    %45 = arith.truncf %44 : vector<8x8xf32> to vector<8x8xbf16>
    %cst_19 = arith.constant dense<0.000000e+00> : vector<8x8xf32>
    %46 = tpu.matmul %41, %43, %cst_19 {dimension_numbers = #tpu.dot_dimension_numbers<[1], [1], [0], [0], [0, 0, 1, 0], [], []>} : vector<8x8xbf16>, vector<8x8xbf16>, vector<8x8xf32> -> vector<8x8xf32>
    %cst_20 = arith.constant dense<0xFF800000> : vector<8xf32>
    %47 = vector.multi_reduction <maximumf>, %46, %cst_20 [1] : vector<8x8xf32> to vector<8xf32>
    %48 = vector.shape_cast %47 : vector<8xf32> to vector<8x1xf32>
    %49 = vector.broadcast %48 : vector<8x1xf32> to vector<8x8xf32>
    %50 = arith.subf %46, %49 : vector<8x8xf32>
    %51 = math.exp %50 : vector<8x8xf32>
    %cst_21 = arith.constant dense<0.000000e+00> : vector<8xf32>
    %52 = vector.multi_reduction <add>, %51, %cst_21 [1] : vector<8x8xf32> to vector<8xf32>
    %53 = vector.shape_cast %52 : vector<8xf32> to vector<8x1xf32>
    %54 = tpu.reciprocal %53 {approx = true} : vector<8x1xf32> -> vector<8x1xf32>
    %55 = vector.broadcast %54 : vector<8x1xf32> to vector<8x8xf32>
    %56 = arith.mulf %51, %55 : vector<8x8xf32>
    %57 = arith.truncf %56 : vector<8x8xf32> to vector<8x8xbf16>
    %cst_22 = arith.constant dense<0.000000e+00> : vector<8x8xf32>
    %58 = tpu.matmul %57, %45, %cst_22 {dimension_numbers = #tpu.dot_dimension_numbers<[1], [0], [0], [1], [0, 0, 1, 1], [], []>} : vector<8x8xbf16>, vector<8x8xbf16>, vector<8x8xf32> -> vector<8x8xf32>
    %59 = vector.extract_strided_slice %19 {offsets = [0, 16], sizes = [8, 8], strides = [1, 1]} : vector<8x32xf32> to vector<8x8xf32>
    %60 = arith.truncf %59 : vector<8x8xf32> to vector<8x8xbf16>
    %61 = vector.extract_strided_slice %20 {offsets = [0, 16], sizes = [8, 8], strides = [1, 1]} : vector<8x32xf32> to vector<8x8xf32>
    %62 = arith.truncf %61 : vector<8x8xf32> to vector<8x8xbf16>
    %63 = vector.extract_strided_slice %16 {offsets = [0, 16], sizes = [8, 8], strides = [1, 1]} : vector<8x32xf32> to vector<8x8xf32>
    %64 = arith.truncf %63 : vector<8x8xf32> to vector<8x8xbf16>
    %cst_23 = arith.constant dense<0.000000e+00> : vector<8x8xf32>
    %65 = tpu.matmul %60, %62, %cst_23 {dimension_numbers = #tpu.dot_dimension_numbers<[1], [1], [0], [0], [0, 0, 1, 0], [], []>} : vector<8x8xbf16>, vector<8x8xbf16>, vector<8x8xf32> -> vector<8x8xf32>
    %cst_24 = arith.constant dense<0xFF800000> : vector<8xf32>
    %66 = vector.multi_reduction <maximumf>, %65, %cst_24 [1] : vector<8x8xf32> to vector<8xf32>
    %67 = vector.shape_cast %66 : vector<8xf32> to vector<8x1xf32>
    %68 = vector.broadcast %67 : vector<8x1xf32> to vector<8x8xf32>
    %69 = arith.subf %65, %68 : vector<8x8xf32>
    %70 = math.exp %69 : vector<8x8xf32>
    %cst_25 = arith.constant dense<0.000000e+00> : vector<8xf32>
    %71 = vector.multi_reduction <add>, %70, %cst_25 [1] : vector<8x8xf32> to vector<8xf32>
    %72 = vector.shape_cast %71 : vector<8xf32> to vector<8x1xf32>
    %73 = tpu.reciprocal %72 {approx = true} : vector<8x1xf32> -> vector<8x1xf32>
    %74 = vector.broadcast %73 : vector<8x1xf32> to vector<8x8xf32>
    %75 = arith.mulf %70, %74 : vector<8x8xf32>
    %76 = arith.truncf %75 : vector<8x8xf32> to vector<8x8xbf16>
    %cst_26 = arith.constant dense<0.000000e+00> : vector<8x8xf32>
    %77 = tpu.matmul %76, %64, %cst_26 {dimension_numbers = #tpu.dot_dimension_numbers<[1], [0], [0], [1], [0, 0, 1, 1], [], []>} : vector<8x8xbf16>, vector<8x8xbf16>, vector<8x8xf32> -> vector<8x8xf32>
    %78 = vector.extract_strided_slice %19 {offsets = [0, 24], sizes = [8, 8], strides = [1, 1]} : vector<8x32xf32> to vector<8x8xf32>
    %79 = arith.truncf %78 : vector<8x8xf32> to vector<8x8xbf16>
    %80 = vector.extract_strided_slice %20 {offsets = [0, 24], sizes = [8, 8], strides = [1, 1]} : vector<8x32xf32> to vector<8x8xf32>
    %81 = arith.truncf %80 : vector<8x8xf32> to vector<8x8xbf16>
    %82 = vector.extract_strided_slice %16 {offsets = [0, 24], sizes = [8, 8], strides = [1, 1]} : vector<8x32xf32> to vector<8x8xf32>
    %83 = arith.truncf %82 : vector<8x8xf32> to vector<8x8xbf16>
    %cst_27 = arith.constant dense<0.000000e+00> : vector<8x8xf32>
    %84 = tpu.matmul %79, %81, %cst_27 {dimension_numbers = #tpu.dot_dimension_numbers<[1], [1], [0], [0], [0, 0, 1, 0], [], []>} : vector<8x8xbf16>, vector<8x8xbf16>, vector<8x8xf32> -> vector<8x8xf32>
    %cst_28 = arith.constant dense<0xFF800000> : vector<8xf32>
    %85 = vector.multi_reduction <maximumf>, %84, %cst_28 [1] : vector<8x8xf32> to vector<8xf32>
    %86 = vector.shape_cast %85 : vector<8xf32> to vector<8x1xf32>
    %87 = vector.broadcast %86 : vector<8x1xf32> to vector<8x8xf32>
    %88 = arith.subf %84, %87 : vector<8x8xf32>
    %89 = math.exp %88 : vector<8x8xf32>
    %cst_29 = arith.constant dense<0.000000e+00> : vector<8xf32>
    %90 = vector.multi_reduction <add>, %89, %cst_29 [1] : vector<8x8xf32> to vector<8xf32>
    %91 = vector.shape_cast %90 : vector<8xf32> to vector<8x1xf32>
    %92 = tpu.reciprocal %91 {approx = true} : vector<8x1xf32> -> vector<8x1xf32>
    %93 = vector.broadcast %92 : vector<8x1xf32> to vector<8x8xf32>
    %94 = arith.mulf %89, %93 : vector<8x8xf32>
    %95 = arith.truncf %94 : vector<8x8xf32> to vector<8x8xbf16>
    %cst_30 = arith.constant dense<0.000000e+00> : vector<8x8xf32>
    %96 = tpu.matmul %95, %83, %cst_30 {dimension_numbers = #tpu.dot_dimension_numbers<[1], [0], [0], [1], [0, 0, 1, 1], [], []>} : vector<8x8xbf16>, vector<8x8xbf16>, vector<8x8xf32> -> vector<8x8xf32>
    %97 = tpu.concatenate %39, %58, %77, %96 in 1 : vector<8x8xf32>, vector<8x8xf32>, vector<8x8xf32>, vector<8x8xf32> -> vector<8x32xf32>
    %98 = arith.truncf %97 : vector<8x32xf32> to vector<8x32xbf16>
    %c0_31 = arith.constant 0 : index
    %c0_32 = arith.constant 0 : index
    %99 = vector.load %arg7[%c0_31, %c0_32] : memref<32x32xbf16, #tpu.memory_space<vmem>>, vector<32x32xbf16>
    %cst_33 = arith.constant dense<0.000000e+00> : vector<8x32xf32>
    %100 = tpu.matmul %98, %99, %cst_33 {dimension_numbers = #tpu.dot_dimension_numbers<[1], [0], [0], [1], [0, 0, 1, 1], [], []>} : vector<8x32xbf16>, vector<32x32xbf16>, vector<8x32xf32> -> vector<8x32xf32>
    %c0_34 = arith.constant 0 : index
    %c0_35 = arith.constant 0 : index
    %101 = vector.load %arg8[%c0_34, %c0_35] : memref<1x32xf32, #tpu.memory_space<vmem>>, vector<1x32xf32>
    %102 = vector.broadcast %101 : vector<1x32xf32> to vector<8x32xf32>
    %103 = arith.addf %100, %102 : vector<8x32xf32>
    %cst_36 = arith.constant dense<0.000000e+00> : vector<8xf32>
    %104 = vector.multi_reduction <add>, %103, %cst_36 [1] : vector<8x32xf32> to vector<8xf32>
    %105 = vector.shape_cast %104 : vector<8xf32> to vector<8x1xf32>
    %cst_37 = arith.constant 3.200000e+01 : f32
    %106 = vector.broadcast %cst_37 : f32 to vector<8x1xf32>
    %107 = arith.divf %105, %106 : vector<8x1xf32>
    %108 = vector.broadcast %107 : vector<8x1xf32> to vector<8x32xf32>
    %109 = arith.subf %103, %108 : vector<8x32xf32>
    %110 = arith.mulf %109, %109 : vector<8x32xf32>
    %cst_38 = arith.constant dense<0.000000e+00> : vector<8xf32>
    %111 = vector.multi_reduction <add>, %110, %cst_38 [1] : vector<8x32xf32> to vector<8xf32>
    %112 = vector.shape_cast %111 : vector<8xf32> to vector<8x1xf32>
    %cst_39 = arith.constant 3.200000e+01 : f32
    %113 = vector.broadcast %cst_39 : f32 to vector<8x1xf32>
    %114 = arith.divf %112, %113 : vector<8x1xf32>
    %cst_40 = arith.constant 9.99999974E-6 : f32
    %115 = vector.broadcast %cst_40 : f32 to vector<8x1xf32>
    %116 = arith.addf %114, %115 : vector<8x1xf32>
    %117 = math.rsqrt %116 : vector<8x1xf32>
    %118 = vector.broadcast %117 : vector<8x1xf32> to vector<8x32xf32>
    %119 = arith.mulf %109, %118 : vector<8x32xf32>
    %c0_41 = arith.constant 0 : index
    %c0_42 = arith.constant 0 : index
    %120 = vector.load %arg9[%c0_41, %c0_42] : memref<1x32xf32, #tpu.memory_space<vmem>>, vector<1x32xf32>
    %121 = vector.broadcast %120 : vector<1x32xf32> to vector<8x32xf32>
    %122 = arith.mulf %119, %121 : vector<8x32xf32>
    %c0_43 = arith.constant 0 : index
    %c0_44 = arith.constant 0 : index
    %123 = vector.load %arg10[%c0_43, %c0_44] : memref<1x32xf32, #tpu.memory_space<vmem>>, vector<1x32xf32>
    %124 = vector.broadcast %123 : vector<1x32xf32> to vector<8x32xf32>
    %125 = arith.addf %122, %124 : vector<8x32xf32>
    %c0_45 = arith.constant 0 : index
    %c0_46 = arith.constant 0 : index
    %c0_47 = arith.constant 0 : index
    %126 = vector.load %arg11[%c0_45, %c0_46, %c0_47] : memref<1x8x32xf32, #tpu.memory_space<vmem>>, vector<1x8x32xf32>
    %127 = vector.shape_cast %126 : vector<1x8x32xf32> to vector<8x32xf32>
    %128 = vector.shape_cast %125 : vector<8x32xf32> to vector<1x8x32xf32>
    tpu.vector_store %arg11[%c0_45, %c0_46, %c0_47], %128 {strides = array<i32>} : memref<1x8x32xf32, #tpu.memory_space<vmem>>, vector<1x8x32xf32>,
    return
  }
  func.func @transform_0(%arg0: i32) -> (i32, i32, i32) {
    %c0_i32 = arith.constant 0 : i32
    %c0_i32_0 = arith.constant 0 : i32
    %c0_i32_1 = arith.constant 0 : i32
    return %arg0, %c0_i32, %c0_i32_0 : i32, i32, i32
  }
  func.func @transform_1(%arg0: i32) -> (i32, i32, i32) {
    %c0_i32 = arith.constant 0 : i32
    %c0_i32_0 = arith.constant 0 : i32
    %c0_i32_1 = arith.constant 0 : i32
    return %arg0, %c0_i32, %c0_i32_0 : i32, i32, i32
  }
  func.func @transform_2(%arg0: i32) -> (i32, i32) {
    %c0_i32 = arith.constant 0 : i32
    %c0_i32_0 = arith.constant 0 : i32
    %c0_i32_1 = arith.constant 0 : i32
    return %c0_i32, %c0_i32_0 : i32, i32
  }
  func.func @transform_3(%arg0: i32) -> (i32, i32) {
    %c0_i32 = arith.constant 0 : i32
    %c0_i32_0 = arith.constant 0 : i32
    %c0_i32_1 = arith.constant 0 : i32
    return %c0_i32, %c0_i32_0 : i32, i32
  }
  func.func @transform_4(%arg0: i32) -> (i32, i32) {
    %c0_i32 = arith.constant 0 : i32
    %c0_i32_0 = arith.constant 0 : i32
    %c0_i32_1 = arith.constant 0 : i32
    return %c0_i32, %c0_i32_0 : i32, i32
  }
  func.func @transform_5(%arg0: i32) -> (i32, i32) {
    %c0_i32 = arith.constant 0 : i32
    %c0_i32_0 = arith.constant 0 : i32
    %c0_i32_1 = arith.constant 0 : i32
    return %c0_i32, %c0_i32_0 : i32, i32
  }
  func.func @transform_6(%arg0: i32) -> (i32, i32) {
    %c0_i32 = arith.constant 0 : i32
    %c0_i32_0 = arith.constant 0 : i32
    %c0_i32_1 = arith.constant 0 : i32
    return %c0_i32, %c0_i32_0 : i32, i32
  }
  func.func @transform_7(%arg0: i32) -> (i32, i32) {
    %c0_i32 = arith.constant 0 : i32
    %c0_i32_0 = arith.constant 0 : i32
    %c0_i32_1 = arith.constant 0 : i32
    return %c0_i32, %c0_i32_0 : i32, i32
  }
  func.func @transform_8(%arg0: i32) -> (i32, i32) {
    %c0_i32 = arith.constant 0 : i32
    %c0_i32_0 = arith.constant 0 : i32
    %c0_i32_1 = arith.constant 0 : i32
    return %c0_i32, %c0_i32_0 : i32, i32
  }
  func.func @transform_9(%arg0: i32) -> (i32, i32) {
    %c0_i32 = arith.constant 0 : i32
    %c0_i32_0 = arith.constant 0 : i32
    %c0_i32_1 = arith.constant 0 : i32
    return %c0_i32, %c0_i32_0 : i32, i32
  }
  func.func @transform_10(%arg0: i32) -> (i32, i32, i32) {
    %c0_i32 = arith.constant 0 : i32
    %c0_i32_0 = arith.constant 0 : i32
    %c0_i32_1 = arith.constant 0 : i32
    return %arg0, %c0_i32, %c0_i32_0 : i32, i32, i32
  }
}

</mosaic_0001>

<llo_original>
// kernel: transformer_encoder_layer.3
$region0: #{transformer_encoder_layer.3}
  #allocation0 [shape = 'u32[]', space=smem, size = 0x4, offset = 0x4, fixed_abs, tag = 'smem constant byte address 0x4 - core index']
  #allocation1 [shape = 'u32[144,128]{1,0:T(1,128)}', space=vmem, size = 0x12000, scoped, tag = 'internal scratch']
  %s0 = inlined_call_operand.vmem [shape: f32[16,32], index: 0, kind: input, shape index: {}]
  %s1 = inlined_call_operand.vmem [shape: bf16[32,64], index: 1, kind: input, shape index: {}]
  %s2 = inlined_call_operand.vmem [shape: f32[1,64], index: 2, kind: input, shape index: {}]
  %s3 = inlined_call_operand.vmem [shape: bf16[64,32], index: 3, kind: input, shape index: {}]
  %s4 = inlined_call_operand.vmem [shape: f32[1,32], index: 4, kind: input, shape index: {}]
  %s5 = inlined_call_operand.vmem [shape: f32[1,32], index: 5, kind: input, shape index: {}]
  %s6 = inlined_call_operand.vmem [shape: f32[1,32], index: 6, kind: input, shape index: {}]
  %s7 = inlined_call_operand.vmem [shape: f32[16,32], index: 7, kind: output, shape index: {}]
  %s8 = sld [smem:[#allocation0]]
  $region61: #{transformer_encoder_layer.3} parent=0
    _
  %s10 = ssub.s32 1, %s8
  %s11 = scalar_select 0, %s10, %s8
  loop: start=0, step=1, limit=4
  $region2: #{transformer_encoder_layer.3} parent=0 // loop_pre_header
    _
  $region3: #{transformer_encoder_layer.3} parent=0 // loop_header
    %s13 = sphi 0, %s17
    %p14 = scmp.ge.s32.totalorder %s13, 4
    %s23 = sphi 0, %s25
    %s26 = sphi 0, %s23
    %s27 = sphi 0, %s26
    %s43 = sphi 0, %s27
    %s47 = sphi 0, %s47
    %s49 = sphi 0, %s47
    %s50 = sphi 0, %s49
    %s64 = sphi 0, %s50
    %s68 = sphi 0, %s68
    %s70 = sphi 0, %s68
    %s71 = sphi 0, %s70
    %s85 = sphi 0, %s71
    %s89 = sphi 0, %s89
    %s91 = sphi 0, %s89
    %s92 = sphi 0, %s91
    %s106 = sphi 0, %s92
    %s110 = sphi 0, %s110
    %s112 = sphi 0, %s110
    %s113 = sphi 0, %s112
    %s127 = sphi 0, %s113
    %s131 = sphi 0, %s131
    %s133 = sphi 0, %s131
    %s134 = sphi 0, %s133
    %s148 = sphi 0, %s134
    %s152 = sphi 0, %s152
    %s154 = sphi 0, %s152
    %s155 = sphi 0, %s154
    %s169 = sphi 0, %s155
    %s175 = sphi 0, %s177
    %s178 = sphi 0, %s175
    %s179 = sphi 0, %s178
    %s195 = sphi 0, %s179
  $region4: #{transformer_encoder_layer.3} parent=0 // loop_header_branch
    %16 = sbr.rel (%p14) target = $region8
  $region5: #{transformer_encoder_layer.3} parent=0 // loop_body
    %s18 = ssub.s32 %s13, 1
    %s19 = ssub.s32 %s13, 2
    %s20 = sadd.s32 %s13, 1
    %s21 = ssub.s32 %s13, %s20
    %p22 = scmp.eq.s32.totalorder %s21, 0
    %s24 = sadd.s32 %s23, 1
    %s25 = scalar_select %p22, %s23, %s24
    %p28 = pneg %p22
    %p29 = scmp.eq.s32.totalorder %s13, 1
    %p30 = por %p28, %p29
    %p31 = scmp.ne.s32.totalorder %s23, %s26
    %p32 = scmp.eq.s32.totalorder %s13, 0
    %p33 = por %p31, %p32
    %p34 = scmp.ne.s32.totalorder %s23, %s26
    %p35 = scmp.eq.s32.totalorder %s18, 1
    %p36 = por %p34, %p35
    %p37 = scmp.ne.s32.totalorder %s26, %s27
    %p38 = scmp.eq.s32.totalorder %s18, 0
    %p39 = por %p37, %p38
    %p40 = scmp.ne.s32.totalorder %s26, %s27
    %p41 = scmp.eq.s32.totalorder %s19, 1
    %p42 = por %p40, %p41
    %p44 = scmp.ne.s32.totalorder %s27, %s43
    %p45 = scmp.eq.s32.totalorder %s19, 0
    %p46 = por %p44, %p45
    %s48 = sadd.s32 %s47, 1
    %p51 = scmp.eq.s32.totalorder %s13, 1
    %p52 = scmp.ne.s32.totalorder %s47, %s49
    %p53 = scmp.eq.s32.totalorder %s13, 0
    %p54 = por %p52, %p53
    %p55 = scmp.ne.s32.totalorder %s47, %s49
    %p56 = scmp.eq.s32.totalorder %s18, 1
    %p57 = por %p55, %p56
    %p58 = scmp.ne.s32.totalorder %s49, %s50
    %p59 = scmp.eq.s32.totalorder %s18, 0
    %p60 = por %p58, %p59
    %p61 = scmp.ne.s32.totalorder %s49, %s50
    %p62 = scmp.eq.s32.totalorder %s19, 1
    %p63 = por %p61, %p62
    %p65 = scmp.ne.s32.totalorder %s50, %s64
    %p66 = scmp.eq.s32.totalorder %s19, 0
    %p67 = por %p65, %p66
    %s69 = sadd.s32 %s68, 1
    %p72 = scmp.eq.s32.totalorder %s13, 1
    %p73 = scmp.ne.s32.totalorder %s68, %s70
    %p74 = scmp.eq.s32.totalorder %s13, 0
    %p75 = por %p73, %p74
    %p76 = scmp.ne.s32.totalorder %s68, %s70
    %p77 = scmp.eq.s32.totalorder %s18, 1
    %p78 = por %p76, %p77
    %p79 = scmp.ne.s32.totalorder %s70, %s71
    %p80 = scmp.eq.s32.totalorder %s18, 0
    %p81 = por %p79, %p80
    %p82 = scmp.ne.s32.totalorder %s70, %s71
    %p83 = scmp.eq.s32.totalorder %s19, 1
    %p84 = por %p82, %p83
    %p86 = scmp.ne.s32.totalorder %s71, %s85
    %p87 = scmp.eq.s32.totalorder %s19, 0
    %p88 = por %p86, %p87
    %s90 = sadd.s32 %s89, 1
    %p93 = scmp.eq.s32.totalorder %s13, 1
    %p94 = scmp.ne.s32.totalorder %s89, %s91
    %p95 = scmp.eq.s32.totalorder %s13, 0
    %p96 = por %p94, %p95
    %p97 = scmp.ne.s32.totalorder %s89, %s91
    %p98 = scmp.eq.s32.totalorder %s18, 1
    %p99 = por %p97, %p98
    %p100 = scmp.ne.s32.totalorder %s91, %s92
    %p101 = scmp.eq.s32.totalorder %s18, 0
    %p102 = por %p100, %p101
    %p103 = scmp.ne.s32.totalorder %s91, %s92
    %p104 = scmp.eq.s32.totalorder %s19, 1
    %p105 = por %p103, %p104
    %p107 = scmp.ne.s32.totalorder %s92, %s106
    %p108 = scmp.eq.s32.totalorder %s19, 0
    %p109 = por %p107, %p108
    %s111 = sadd.s32 %s110, 1
    %p114 = scmp.eq.s32.totalorder %s13, 1
    %p115 = scmp.ne.s32.totalorder %s110, %s112
    %p116 = scmp.eq.s32.totalorder %s13, 0
    %p117 = por %p115, %p116
    %p118 = scmp.ne.s32.totalorder %s110, %s112
    %p119 = scmp.eq.s32.totalorder %s18, 1
    %p120 = por %p118, %p119
    %p121 = scmp.ne.s32.totalorder %s112, %s113
    %p122 = scmp.eq.s32.totalorder %s18, 0
    %p123 = por %p121, %p122
    %p124 = scmp.ne.s32.totalorder %s112, %s113
    %p125 = scmp.eq.s32.totalorder %s19, 1
    %p126 = por %p124, %p125
    %p128 = scmp.ne.s32.totalorder %s113, %s127
    %p129 = scmp.eq.s32.totalorder %s19, 0
    %p130 = por %p128, %p129
    %s132 = sadd.s32 %s131, 1
    %p135 = scmp.eq.s32.totalorder %s13, 1
    %p136 = scmp.ne.s32.totalorder %s131, %s133
    %p137 = scmp.eq.s32.totalorder %s13, 0
    %p138 = por %p136, %p137
    %p139 = scmp.ne.s32.totalorder %s131, %s133
    %p140 = scmp.eq.s32.totalorder %s18, 1
    %p141 = por %p139, %p140
    %p142 = scmp.ne.s32.totalorder %s133, %s134
    %p143 = scmp.eq.s32.totalorder %s18, 0
    %p144 = por %p142, %p143
    %p145 = scmp.ne.s32.totalorder %s133, %s134
    %p146 = scmp.eq.s32.totalorder %s19, 1
    %p147 = por %p145, %p146
    %p149 = scmp.ne.s32.totalorder %s134, %s148
    %p150 = scmp.eq.s32.totalorder %s19, 0
    %p151 = por %p149, %p150
    %s153 = sadd.s32 %s152, 1
    %p156 = scmp.eq.s32.totalorder %s13, 1
    %p157 = scmp.ne.s32.totalorder %s152, %s154
    %p158 = scmp.eq.s32.totalorder %s13, 0
    %p159 = por %p157, %p158
    %p160 = scmp.ne.s32.totalorder %s152, %s154
    %p161 = scmp.eq.s32.totalorder %s18, 1
    %p162 = por %p160, %p161
    %p163 = scmp.ne.s32.totalorder %s154, %s155
    %p164 = scmp.eq.s32.totalorder %s18, 0
    %p165 = por %p163, %p164
    %p166 = scmp.ne.s32.totalorder %s154, %s155
    %p167 = scmp.eq.s32.totalorder %s19, 1
    %p168 = por %p166, %p167
    %p170 = scmp.ne.s32.totalorder %s155, %s169
    %p171 = scmp.eq.s32.totalorder %s19, 0
    %p172 = por %p170, %p171
    %s173 = ssub.s32 %s13, %s20
    %p174 = scmp.eq.s32.totalorder %s173, 0
    %s176 = sadd.s32 %s175, 1
    %s177 = scalar_select %p174, %s175, %s176
    %p180 = pneg %p174
    %p181 = scmp.eq.s32.totalorder %s13, 1
    %p182 = por %p180, %p181
    %p183 = scmp.ne.s32.totalorder %s175, %s178
    %p184 = scmp.eq.s32.totalorder %s13, 0
    %p185 = por %p183, %p184
    %p186 = scmp.ne.s32.totalorder %s175, %s178
    %p187 = scmp.eq.s32.totalorder %s18, 1
    %p188 = por %p186, %p187
    %p189 = scmp.ne.s32.totalorder %s178, %s179
    %p190 = scmp.eq.s32.totalorder %s18, 0
    %p191 = por %p189, %p190
    %p192 = scmp.ne.s32.totalorder %s178, %s179
    %p193 = scmp.eq.s32.totalorder %s19, 1
    %p194 = por %p192, %p193
    %p196 = scmp.ne.s32.totalorder %s179, %s195
    %p197 = scmp.eq.s32.totalorder %s19, 0
    %p198 = por %p196, %p197
    %p199 = scmp.le.s32.totalorder 1, %s13
    %p200 = scmp.lt.s32.totalorder %s13, 3
    %p201 = pnand %p199, %p200
    %p202 = pneg %p201
    // Predicated region
    $region9: #{transformer_encoder_layer.3} parent=5 // pred_check
      _
    $region10: #{transformer_encoder_layer.3} parent=5 // pred_check_branch
      %204 = sbr.rel (%p201) target = $region12
    $region11: #{transformer_encoder_layer.3} parent=5 // pred_region
      %s205 = ssub.s32 %s13, 1
      // Predicated region
      $region13: #{transformer_encoder_layer.3} parent=11 // pred_check
        %p206 = pneg %p60
      $region14: #{transformer_encoder_layer.3} parent=11 // pred_check_branch
        %208 = sbr.rel (%p206) target = $region16
      $region15: #{transformer_encoder_layer.3} parent=11 // pred_region
        _
      $region16: #{transformer_encoder_layer.3} parent=11 // pred_fallthru
        _
      // Predicated region
      $region17: #{transformer_encoder_layer.3} parent=11 // pred_check
        %p209 = pneg %p81
      $region18: #{transformer_encoder_layer.3} parent=11 // pred_check_branch
        %211 = sbr.rel (%p209) target = $region20
      $region19: #{transformer_encoder_layer.3} parent=11 // pred_region
        _
      $region20: #{transformer_encoder_layer.3} parent=11 // pred_fallthru
        _
      // Predicated region
      $region21: #{transformer_encoder_layer.3} parent=11 // pred_check
        %p212 = pneg %p102
      $region22: #{transformer_encoder_layer.3} parent=11 // pred_check_branch
        %214 = sbr.rel (%p212) target = $region24
      $region23: #{transformer_encoder_layer.3} parent=11 // pred_region
        _
      $region24: #{transformer_encoder_layer.3} parent=11 // pred_fallthru
        _
      // Predicated region
      $region25: #{transformer_encoder_layer.3} parent=11 // pred_check
        %p215 = pneg %p123
      $region26: #{transformer_encoder_layer.3} parent=11 // pred_check_branch
        %217 = sbr.rel (%p215) target = $region28
      $region27: #{transformer_encoder_layer.3} parent=11 // pred_region
        _
      $region28: #{transformer_encoder_layer.3} parent=11 // pred_fallthru
        _
      // Predicated region
      $region29: #{transformer_encoder_layer.3} parent=11 // pred_check
        %p218 = pneg %p144
      $region30: #{transformer_encoder_layer.3} parent=11 // pred_check_branch
        %220 = sbr.rel (%p218) target = $region32
      $region31: #{transformer_encoder_layer.3} parent=11 // pred_region
        _
      $region32: #{transformer_encoder_layer.3} parent=11 // pred_fallthru
        _
      // Predicated region
      $region33: #{transformer_encoder_layer.3} parent=11 // pred_check
        %p221 = pneg %p165
      $region34: #{transformer_encoder_layer.3} parent=11 // pred_check_branch
        %223 = sbr.rel (%p221) target = $region36
      $region35: #{transformer_encoder_layer.3} parent=11 // pred_region
        _
      $region36: #{transformer_encoder_layer.3} parent=11 // pred_fallthru
        _
    $region12: #{transformer_encoder_layer.3} parent=5 // pred_fallthru
      _
    %p224 = scmp.lt.s32.totalorder %s13, 2
    // Predicated region
    $region37: #{transformer_encoder_layer.3} parent=5 // pred_check
      %p225 = pneg %p224
    $region38: #{transformer_encoder_layer.3} parent=5 // pred_check_branch
      %227 = sbr.rel (%p225) target = $region40
    $region39: #{transformer_encoder_layer.3} parent=5 // pred_region
      // Predicated region
      $region41: #{transformer_encoder_layer.3} parent=39 // pred_check
        %p228 = pneg %p33
      $region42: #{transformer_encoder_layer.3} parent=39 // pred_check_branch
        %230 = sbr.rel (%p228) target = $region44
      $region43: #{transformer_encoder_layer.3} parent=39 // pred_region
        %p231 = scmp.lt.s32.totalorder %s13, 1
        %s232 = scalar_select %p231, %s13, 1
        %s233 = smul.addr %s232, 8
        %s234 = scalar_lea.vmem %s0, %s233
      $region44: #{transformer_encoder_layer.3} parent=39 // pred_fallthru
        _
    $region40: #{transformer_encoder_layer.3} parent=5 // pred_fallthru
      _
    %p235 = scmp.le.s32.totalorder 1, %s13
    %p236 = scmp.lt.s32.totalorder %s13, 3
    %p237 = pnand %p235, %p236
    %p238 = pneg %p237
    // Predicated region
    $region45: #{transformer_encoder_layer.3} parent=5 // pred_check
      _
    $region46: #{transformer_encoder_layer.3} parent=5 // pred_check_branch
      %240 = sbr.rel (%p237) target = $region48
    $region47: #{transformer_encoder_layer.3} parent=5 // pred_region
      %s241 = ssub.s32 %s13, 1
      %p242 = scmp.lt.s32.totalorder %s18, 1
      %s243 = scalar_select %p242, %s18, 1
      %s244 = smul.addr %s243, 8
      %s245 = scalar_lea.vmem %s0, %s244
      %p246 = pneg %p39
      %p247 = pneg %p36
      %p248 = pneg %p60
      %p249 = pneg %p57
      %p250 = pneg %p81
      %p251 = pneg %p78
      %p252 = pneg %p102
      %p253 = pneg %p99
      %p254 = pneg %p123
      %p255 = pneg %p120
      %p256 = pneg %p144
      %p257 = pneg %p141
      %p258 = pneg %p165
      %p259 = pneg %p162
      %p260 = pneg %p191
      %p261 = pneg %p188
      %p262 = scmp.lt.s32.totalorder %s18, 1
      %s263 = scalar_select %p262, %s18, 1
      %s264 = smul.addr %s263, 8
      %s265 = scalar_lea.vmem %s7, %s264
      %p266 = scmp.lt.s32.totalorder %s18, 1
      %s267 = scalar_select %p266, %s18, 1
      %s268 = smul.addr %s267, 8
      %s269 = scalar_lea.vmem %s0, %s268
      %p270 = scmp.lt.s32.totalorder %s18, 1
      %s271 = scalar_select %p270, %s18, 1
      %s272 = smul.addr %s271, 8
      %s273 = scalar_lea.vmem %s7, %s272
      %v275 = vld [vmem:[%s269] sm:$0xff]
      %v276 = vpack.c.bf16 %v275, %v275
      %v277 = vld [vmem:[%s1] sm:$0xf]
      %v278 = vld [vmem:[%s1 + $0x4] sm:$0xf]
      %v279 = vld [vmem:[%s1 + $0x8] sm:$0xf]
      %v280 = vld [vmem:[%s1 + $0xc] sm:$0xf]
      %v281 = vld [vmem:[%s2] sm:$0x1]
      %v283 = vlaneseq
      %v284 = vshrl.u32 %v283, 7
      %v285 = vsub.s32 0, %v284
      %v286 = vrot.slane %v281, %v285
      %v292 = vunpack.c.l.b16 %v277
      %v293 = vunpack.c.l.b16 %v278
      %v294 = vunpack.c.l.b16 %v279
      %v295 = vunpack.c.l.b16 %v280
      %v296 = vpack.c.b16 %v293, %v292
      %v297 = vpack.c.b16 %v295, %v294
      %vm300 = vcmask 261120
      %v302 = vsel %vm300, %v276, 0
      %304 = vmatprep.subr.bf16.mxu0 0
      %305 = vmatpush1.bf16.msra.mxu0 0
      %306 = vmatprep.subr.bf16.mxu0 0
      %307 = vmatpush1.bf16.msra.mxu0 0
      %308 = vmatprep.subr.bf16.mxu0 0
      %309 = vmatpush1.bf16.msra.mxu0 0
      %310 = vmatprep.subr.bf16.mxu0 0
      %311 = vmatpush1.bf16.msra.mxu0 0
      %312 = vmatprep.subr.bf16.mxu0 0
      %313 = vmatpush1.bf16.msra.mxu0 0
      %314 = vmatprep.subr.bf16.mxu0 0
      %315 = vmatpush1.bf16.msra.mxu0 0
      %316 = vmatprep.subr.bf16.mxu0 0
      %317 = vmatpush1.bf16.msra.mxu0 %v297
      %318 = vmatprep.subr.bf16.mxu0 0
      %319 = vmatpush1.bf16.msra.mxu0 %v296
      %320 = vmatprep.subr.bf16.mxu0 0
      %321 = vmatpush2.bf16.msra.mxu0 0
      %322 = vmatprep.subr.bf16.mxu0 0
      %323 = vmatpush2.bf16.msra.mxu0 0
      %324 = vmatprep.subr.bf16.mxu0 0
      %325 = vmatpush2.bf16.msra.mxu0 0
      %326 = vmatprep.subr.bf16.mxu0 0
      %327 = vmatpush2.bf16.msra.mxu0 0
      %328 = vmatprep.subr.bf16.mxu0 0
      %329 = vmatpush2.bf16.msra.mxu0 0
      %330 = vmatprep.subr.bf16.mxu0 0
      %331 = vmatpush2.bf16.msra.mxu0 0
      %332 = vmatprep.subr.bf16.mxu0 0
      %333 = vmatpush2.bf16.msra.mxu0 0
      %334 = vmatprep.subr.bf16.mxu0 0
      %335 = vmatpush2.bf16.msra.mxu0 0
      %336 = vmatprep.mubr.bf16.mxu0 0
      %337 = vmatmul.mubr.bf16.gmra.mxu0 %v302
      %v338 = vpop.f32.mrf.mxu0
      %v339 = vadd.f32 %v286, %v338
      %v340 = vpop.f32.mrf.mxu0
      %v341 = vpop.f32.mrf.mxu0
      %v342 = vpop.f32.mrf.mxu0
      %343 = vdwg.mxu0
      %v344 = vmax.f32 %v339, 0.0
      %v345 = vpack.c.bf16 %v344, %v344
      %v346 = vld [vmem:[%s3] sm:$0xf]
      %v347 = vld [vmem:[%s3 + $0x4] sm:$0xf]
      %v348 = vld [vmem:[%s3 + $0x8] sm:$0xf]
      %v349 = vld [vmem:[%s3 + $0xc] sm:$0xf]
      %v350 = vld [vmem:[%s3 + $0x10] sm:$0xf]
      %v351 = vld [vmem:[%s3 + $0x14] sm:$0xf]
      %v352 = vld [vmem:[%s3 + $0x18] sm:$0xf]
      %v353 = vld [vmem:[%s3 + $0x1c] sm:$0xf]
      %v354 = vld [vmem:[%s4] sm:$0x1]
      %v356 = vlaneseq
      %v357 = vshrl.u32 %v356, 7
      %v358 = vsub.s32 0, %v357
      %v359 = vrot.slane %v354, %v358
      %v369 = vunpack.c.l.b16 %v346
      %v370 = vunpack.c.l.b16 %v347
      %v371 = vunpack.c.l.b16 %v348
      %v372 = vunpack.c.l.b16 %v349
      %v373 = vunpack.c.l.b16 %v350
      %v374 = vunpack.c.l.b16 %v351
      %v375 = vunpack.c.l.b16 %v352
      %v376 = vunpack.c.l.b16 %v353
      %v377 = vpack.c.b16 %v370, %v369
      %v378 = vpack.c.b16 %v372, %v371
      %v379 = vpack.c.b16 %v374, %v373
      %v380 = vpack.c.b16 %v376, %v375
      %vm385 = vcmask 523264
      %v387 = vsel %vm385, %v345, 0
      %389 = vmatprep.subr.bf16.mxu0 0
      %390 = vmatpush1.bf16.msra.mxu0 0
      %391 = vmatprep.subr.bf16.mxu0 0
      %392 = vmatpush1.bf16.msra.mxu0 0
      %393 = vmatprep.subr.bf16.mxu0 0
      %394 = vmatpush1.bf16.msra.mxu0 0
      %395 = vmatprep.subr.bf16.mxu0 0
      %396 = vmatpush1.bf16.msra.mxu0 0
      %397 = vmatprep.subr.bf16.mxu0 0
      %398 = vmatpush1.bf16.msra.mxu0 %v380
      %399 = vmatprep.subr.bf16.mxu0 0
      %400 = vmatpush1.bf16.msra.mxu0 %v379
      %401 = vmatprep.subr.bf16.mxu0 0
      %402 = vmatpush1.bf16.msra.mxu0 %v378
      %403 = vmatprep.subr.bf16.mxu0 0
      %404 = vmatpush1.bf16.msra.mxu0 %v377
      %405 = vmatprep.subr.bf16.mxu0 0
      %406 = vmatpush2.bf16.msra.mxu0 0
      %407 = vmatprep.subr.bf16.mxu0 0
      %408 = vmatpush2.bf16.msra.mxu0 0
      %409 = vmatprep.subr.bf16.mxu0 0
      %410 = vmatpush2.bf16.msra.mxu0 0
      %411 = vmatprep.subr.bf16.mxu0 0
      %412 = vmatpush2.bf16.msra.mxu0 0
      %413 = vmatprep.subr.bf16.mxu0 0
      %414 = vmatpush2.bf16.msra.mxu0 0
      %415 = vmatprep.subr.bf16.mxu0 0
      %416 = vmatpush2.bf16.msra.mxu0 0
      %417 = vmatprep.subr.bf16.mxu0 0
      %418 = vmatpush2.bf16.msra.mxu0 0
      %419 = vmatprep.subr.bf16.mxu0 0
      %420 = vmatpush2.bf16.msra.mxu0 0
      %421 = vmatprep.mubr.bf16.mxu0 0
      %422 = vmatmul.mubr.bf16.gmra.mxu0 %v387
      %v423 = vpop.f32.mrf.mxu0
      %v424 = vadd.f32 %v359, %v423
      %v425 = vpop.f32.mrf.mxu0
      %v426 = vpop.f32.mrf.mxu0
      %v427 = vpop.f32.mrf.mxu0
      %428 = vdwg.mxu0
      %v429 = vadd.f32 %v275, %v424
      %v430 = vsel %vm300, %v429, 0.0
      %431 = vadd.xlane.f32.xlu0 %v430
      %v432 = vpop.xlane.xlu0 %431
      %v433 = vrcp.pop 32.0
      %v434 = vmul.f32 %v432, %v433
      %v435 = vsub.f32 %v429, %v434
      %v436 = vmul.f32 %v435, %v435
      %v437 = vsel %vm300, %v436, 0.0
      %438 = vadd.xlane.f32.xlu0 %v437
      %v439 = vpop.xlane.xlu0 %438
      %v440 = vmul.f32 %v439, %v433
      %v441 = vadd.f32 %v440, 1e-05
      %v442 = vrsqrt.pop %v441
      %v443 = vmul.f32 %v435, %v442
      %v444 = vld [vmem:[%s5] sm:$0x1]
      %v446 = vlaneseq
      %v447 = vshrl.u32 %v446, 7
      %v448 = vsub.s32 0, %v447
      %v449 = vrot.slane %v444, %v448
      %v451 = vmul.f32 %v443, %v449
      %v452 = vld [vmem:[%s6] sm:$0x1]
      %v454 = vlaneseq
      %v455 = vshrl.u32 %v454, 7
      %v456 = vsub.s32 0, %v455
      %v457 = vrot.slane %v452, %v456
      %v459 = vadd.f32 %v451, %v457
      %460 = vst.msk [vmem:[%s273] sm:$0xff] %vm300, %v459
      %p461 = scmp.lt.s32.totalorder %s18, 1
      %s462 = scalar_select %p461, %s18, 1
      %s463 = smul.addr %s462, 8
      %s464 = scalar_lea.vmem %s7, %s463
      // Predicated region
      $region49: #{transformer_encoder_layer.3} parent=47 // pred_check
        %p465 = pneg %p188
      $region50: #{transformer_encoder_layer.3} parent=47 // pred_check_branch
        %467 = sbr.rel (%p465) target = $region52
      $region51: #{transformer_encoder_layer.3} parent=47 // pred_region
        _
      $region52: #{transformer_encoder_layer.3} parent=47 // pred_fallthru
        _
    $region48: #{transformer_encoder_layer.3} parent=5 // pred_fallthru
      _
    %p468 = scmp.le.s32.totalorder 2, %s13
    // Predicated region
    $region53: #{transformer_encoder_layer.3} parent=5 // pred_check
      %p469 = pneg %p468
    $region54: #{transformer_encoder_layer.3} parent=5 // pred_check_branch
      %471 = sbr.rel (%p469) target = $region56
    $region55: #{transformer_encoder_layer.3} parent=5 // pred_region
      %s472 = ssub.s32 %s13, 2
      // Predicated region
      $region57: #{transformer_encoder_layer.3} parent=55 // pred_check
        %p473 = pneg %p194
      $region58: #{transformer_encoder_layer.3} parent=55 // pred_check_branch
        %475 = sbr.rel (%p473) target = $region60
      $region59: #{transformer_encoder_layer.3} parent=55 // pred_region
        %p476 = scmp.lt.s32.totalorder %s19, 1
        %s477 = scalar_select %p476, %s19, 1
        %s478 = smul.addr %s477, 8
        %s479 = scalar_lea.vmem %s7, %s478
      $region60: #{transformer_encoder_layer.3} parent=55 // pred_fallthru
        _
    $region56: #{transformer_encoder_layer.3} parent=5 // pred_fallthru
      _
  $region6: #{transformer_encoder_layer.3} parent=0 // loop_footer
    %s17 = sadd.s32 1, %s13
  $region7: #{transformer_encoder_layer.3} parent=0 // loop_footer_branch
    %12 = sbr.rel target = $region3
  $region8: #{transformer_encoder_layer.3} parent=0 // loop_exit
    _

// kernel: transformer_encoder_layer.2
$region0: #{transformer_encoder_layer.2}
  #allocation0 [shape = 'u32[]', space=smem, size = 0x4, offset = 0x4, fixed_abs, tag = 'smem constant byte address 0x4 - core index']
  #allocation1 [shape = 'u32[144,128]{1,0:T(1,128)}', space=vmem, size = 0x12000, scoped, tag = 'internal scratch']
  %s0 = inlined_call_operand.vmem [shape: f32[2,8,32], index: 0, kind: input, shape index: {}]
  %s1 = inlined_call_operand.vmem [shape: f32[2,8,32], index: 1, kind: input, shape index: {}]
  %s2 = inlined_call_operand.vmem [shape: bf16[32,64], index: 2, kind: input, shape index: {}]
  %s3 = inlined_call_operand.vmem [shape: f32[1,64], index: 3, kind: input, shape index: {}]
  %s4 = inlined_call_operand.vmem [shape: bf16[32,32], index: 4, kind: input, shape index: {}]
  %s5 = inlined_call_operand.vmem [shape: f32[1,32], index: 5, kind: input, shape index: {}]
  %s6 = inlined_call_operand.vmem [shape: bf16[32,32], index: 6, kind: input, shape index: {}]
  %s7 = inlined_call_operand.vmem [shape: f32[1,32], index: 7, kind: input, shape index: {}]
  %s8 = inlined_call_operand.vmem [shape: f32[1,32], index: 8, kind: input, shape index: {}]
  %s9 = inlined_call_operand.vmem [shape: f32[1,32], index: 9, kind: input, shape index: {}]
  %s10 = inlined_call_operand.vmem [shape: f32[2,8,32], index: 10, kind: output, shape index: {}]
  %s11 = sld [smem:[#allocation0]]
  $region73: #{transformer_encoder_layer.2} parent=0
    _
  %s13 = ssub.s32 1, %s11
  %s14 = scalar_select 0, %s13, %s11
  loop: start=0, step=1, limit=4
  $region2: #{transformer_encoder_layer.2} parent=0 // loop_pre_header
    _
  $region3: #{transformer_encoder_layer.2} parent=0 // loop_header
    %s16 = sphi 0, %s20
    %p17 = scmp.ge.s32.totalorder %s16, 4
    %s26 = sphi 0, %s28
    %s29 = sphi 0, %s26
    %s30 = sphi 0, %s29
    %s46 = sphi 0, %s30
    %s52 = sphi 0, %s54
    %s55 = sphi 0, %s52
    %s56 = sphi 0, %s55
    %s72 = sphi 0, %s56
    %s76 = sphi 0, %s76
    %s78 = sphi 0, %s76
    %s79 = sphi 0, %s78
    %s93 = sphi 0, %s79
    %s97 = sphi 0, %s97
    %s99 = sphi 0, %s97
    %s100 = sphi 0, %s99
    %s114 = sphi 0, %s100
    %s118 = sphi 0, %s118
    %s120 = sphi 0, %s118
    %s121 = sphi 0, %s120
    %s135 = sphi 0, %s121
    %s139 = sphi 0, %s139
    %s141 = sphi 0, %s139
    %s142 = sphi 0, %s141
    %s156 = sphi 0, %s142
    %s160 = sphi 0, %s160
    %s162 = sphi 0, %s160
    %s163 = sphi 0, %s162
    %s177 = sphi 0, %s163
    %s181 = sphi 0, %s181
    %s183 = sphi 0, %s181
    %s184 = sphi 0, %s183
    %s198 = sphi 0, %s184
    %s202 = sphi 0, %s202
    %s204 = sphi 0, %s202
    %s205 = sphi 0, %s204
    %s219 = sphi 0, %s205
    %s223 = sphi 0, %s223
    %s225 = sphi 0, %s223
    %s226 = sphi 0, %s225
    %s240 = sphi 0, %s226
    %s246 = sphi 0, %s248
    %s249 = sphi 0, %s246
    %s250 = sphi 0, %s249
    %s266 = sphi 0, %s250
  $region4: #{transformer_encoder_layer.2} parent=0 // loop_header_branch
    %19 = sbr.rel (%p17) target = $region8
  $region5: #{transformer_encoder_layer.2} parent=0 // loop_body
    %s21 = ssub.s32 %s16, 1
    %s22 = ssub.s32 %s16, 2
    %s23 = sadd.s32 %s16, 1
    %s24 = ssub.s32 %s16, %s23
    %p25 = scmp.eq.s32.totalorder %s24, 0
    %s27 = sadd.s32 %s26, 1
    %s28 = scalar_select %p25, %s26, %s27
    %p31 = pneg %p25
    %p32 = scmp.eq.s32.totalorder %s16, 1
    %p33 = por %p31, %p32
    %p34 = scmp.ne.s32.totalorder %s26, %s29
    %p35 = scmp.eq.s32.totalorder %s16, 0
    %p36 = por %p34, %p35
    %p37 = scmp.ne.s32.totalorder %s26, %s29
    %p38 = scmp.eq.s32.totalorder %s21, 1
    %p39 = por %p37, %p38
    %p40 = scmp.ne.s32.totalorder %s29, %s30
    %p41 = scmp.eq.s32.totalorder %s21, 0
    %p42 = por %p40, %p41
    %p43 = scmp.ne.s32.totalorder %s29, %s30
    %p44 = scmp.eq.s32.totalorder %s22, 1
    %p45 = por %p43, %p44
    %p47 = scmp.ne.s32.totalorder %s30, %s46
    %p48 = scmp.eq.s32.totalorder %s22, 0
    %p49 = por %p47, %p48
    %s50 = ssub.s32 %s16, %s23
    %p51 = scmp.eq.s32.totalorder %s50, 0
    %s53 = sadd.s32 %s52, 1
    %s54 = scalar_select %p51, %s52, %s53
    %p57 = pneg %p51
    %p58 = scmp.eq.s32.totalorder %s16, 1
    %p59 = por %p57, %p58
    %p60 = scmp.ne.s32.totalorder %s52, %s55
    %p61 = scmp.eq.s32.totalorder %s16, 0
    %p62 = por %p60, %p61
    %p63 = scmp.ne.s32.totalorder %s52, %s55
    %p64 = scmp.eq.s32.totalorder %s21, 1
    %p65 = por %p63, %p64
    %p66 = scmp.ne.s32.totalorder %s55, %s56
    %p67 = scmp.eq.s32.totalorder %s21, 0
    %p68 = por %p66, %p67
    %p69 = scmp.ne.s32.totalorder %s55, %s56
    %p70 = scmp.eq.s32.totalorder %s22, 1
    %p71 = por %p69, %p70
    %p73 = scmp.ne.s32.totalorder %s56, %s72
    %p74 = scmp.eq.s32.totalorder %s22, 0
    %p75 = por %p73, %p74
    %s77 = sadd.s32 %s76, 1
    %p80 = scmp.eq.s32.totalorder %s16, 1
    %p81 = scmp.ne.s32.totalorder %s76, %s78
    %p82 = scmp.eq.s32.totalorder %s16, 0
    %p83 = por %p81, %p82
    %p84 = scmp.ne.s32.totalorder %s76, %s78
    %p85 = scmp.eq.s32.totalorder %s21, 1
    %p86 = por %p84, %p85
    %p87 = scmp.ne.s32.totalorder %s78, %s79
    %p88 = scmp.eq.s32.totalorder %s21, 0
    %p89 = por %p87, %p88
    %p90 = scmp.ne.s32.totalorder %s78, %s79
    %p91 = scmp.eq.s32.totalorder %s22, 1
    %p92 = por %p90, %p91
    %p94 = scmp.ne.s32.totalorder %s79, %s93
    %p95 = scmp.eq.s32.totalorder %s22, 0
    %p96 = por %p94, %p95
    %s98 = sadd.s32 %s97, 1
    %p101 = scmp.eq.s32.totalorder %s16, 1
    %p102 = scmp.ne.s32.totalorder %s97, %s99
    %p103 = scmp.eq.s32.totalorder %s16, 0
    %p104 = por %p102, %p103
    %p105 = scmp.ne.s32.totalorder %s97, %s99
    %p106 = scmp.eq.s32.totalorder %s21, 1
    %p107 = por %p105, %p106
    %p108 = scmp.ne.s32.totalorder %s99, %s100
    %p109 = scmp.eq.s32.totalorder %s21, 0
    %p110 = por %p108, %p109
    %p111 = scmp.ne.s32.totalorder %s99, %s100
    %p112 = scmp.eq.s32.totalorder %s22, 1
    %p113 = por %p111, %p112
    %p115 = scmp.ne.s32.totalorder %s100, %s114
    %p116 = scmp.eq.s32.totalorder %s22, 0
    %p117 = por %p115, %p116
    %s119 = sadd.s32 %s118, 1
    %p122 = scmp.eq.s32.totalorder %s16, 1
    %p123 = scmp.ne.s32.totalorder %s118, %s120
    %p124 = scmp.eq.s32.totalorder %s16, 0
    %p125 = por %p123, %p124
    %p126 = scmp.ne.s32.totalorder %s118, %s120
    %p127 = scmp.eq.s32.totalorder %s21, 1
    %p128 = por %p126, %p127
    %p129 = scmp.ne.s32.totalorder %s120, %s121
    %p130 = scmp.eq.s32.totalorder %s21, 0
    %p131 = por %p129, %p130
    %p132 = scmp.ne.s32.totalorder %s120, %s121
    %p133 = scmp.eq.s32.totalorder %s22, 1
    %p134 = por %p132, %p133
    %p136 = scmp.ne.s32.totalorder %s121, %s135
    %p137 = scmp.eq.s32.totalorder %s22, 0
    %p138 = por %p136, %p137
    %s140 = sadd.s32 %s139, 1
    %p143 = scmp.eq.s32.totalorder %s16, 1
    %p144 = scmp.ne.s32.totalorder %s139, %s141
    %p145 = scmp.eq.s32.totalorder %s16, 0
    %p146 = por %p144, %p145
    %p147 = scmp.ne.s32.totalorder %s139, %s141
    %p148 = scmp.eq.s32.totalorder %s21, 1
    %p149 = por %p147, %p148
    %p150 = scmp.ne.s32.totalorder %s141, %s142
    %p151 = scmp.eq.s32.totalorder %s21, 0
    %p152 = por %p150, %p151
    %p153 = scmp.ne.s32.totalorder %s141, %s142
    %p154 = scmp.eq.s32.totalorder %s22, 1
    %p155 = por %p153, %p154
    %p157 = scmp.ne.s32.totalorder %s142, %s156
    %p158 = scmp.eq.s32.totalorder %s22, 0
    %p159 = por %p157, %p158
    %s161 = sadd.s32 %s160, 1
    %p164 = scmp.eq.s32.totalorder %s16, 1
    %p165 = scmp.ne.s32.totalorder %s160, %s162
    %p166 = scmp.eq.s32.totalorder %s16, 0
    %p167 = por %p165, %p166
    %p168 = scmp.ne.s32.totalorder %s160, %s162
    %p169 = scmp.eq.s32.totalorder %s21, 1
    %p170 = por %p168, %p169
    %p171 = scmp.ne.s32.totalorder %s162, %s163
    %p172 = scmp.eq.s32.totalorder %s21, 0
    %p173 = por %p171, %p172
    %p174 = scmp.ne.s32.totalorder %s162, %s163
    %p175 = scmp.eq.s32.totalorder %s22, 1
    %p176 = por %p174, %p175
    %p178 = scmp.ne.s32.totalorder %s163, %s177
    %p179 = scmp.eq.s32.totalorder %s22, 0
    %p180 = por %p178, %p179
    %s182 = sadd.s32 %s181, 1
    %p185 = scmp.eq.s32.totalorder %s16, 1
    %p186 = scmp.ne.s32.totalorder %s181, %s183
    %p187 = scmp.eq.s32.totalorder %s16, 0
    %p188 = por %p186, %p187
    %p189 = scmp.ne.s32.totalorder %s181, %s183
    %p190 = scmp.eq.s32.totalorder %s21, 1
    %p191 = por %p189, %p190
    %p192 = scmp.ne.s32.totalorder %s183, %s184
    %p193 = scmp.eq.s32.totalorder %s21, 0
    %p194 = por %p192, %p193
    %p195 = scmp.ne.s32.totalorder %s183, %s184
    %p196 = scmp.eq.s32.totalorder %s22, 1
    %p197 = por %p195, %p196
    %p199 = scmp.ne.s32.totalorder %s184, %s198
    %p200 = scmp.eq.s32.totalorder %s22, 0
    %p201 = por %p199, %p200
    %s203 = sadd.s32 %s202, 1
    %p206 = scmp.eq.s32.totalorder %s16, 1
    %p207 = scmp.ne.s32.totalorder %s202, %s204
    %p208 = scmp.eq.s32.totalorder %s16, 0
    %p209 = por %p207, %p208
    %p210 = scmp.ne.s32.totalorder %s202, %s204
    %p211 = scmp.eq.s32.totalorder %s21, 1
    %p212 = por %p210, %p211
    %p213 = scmp.ne.s32.totalorder %s204, %s205
    %p214 = scmp.eq.s32.totalorder %s21, 0
    %p215 = por %p213, %p214
    %p216 = scmp.ne.s32.totalorder %s204, %s205
    %p217 = scmp.eq.s32.totalorder %s22, 1
    %p218 = por %p216, %p217
    %p220 = scmp.ne.s32.totalorder %s205, %s219
    %p221 = scmp.eq.s32.totalorder %s22, 0
    %p222 = por %p220, %p221
    %s224 = sadd.s32 %s223, 1
    %p227 = scmp.eq.s32.totalorder %s16, 1
    %p228 = scmp.ne.s32.totalorder %s223, %s225
    %p229 = scmp.eq.s32.totalorder %s16, 0
    %p230 = por %p228, %p229
    %p231 = scmp.ne.s32.totalorder %s223, %s225
    %p232 = scmp.eq.s32.totalorder %s21, 1
    %p233 = por %p231, %p232
    %p234 = scmp.ne.s32.totalorder %s225, %s226
    %p235 = scmp.eq.s32.totalorder %s21, 0
    %p236 = por %p234, %p235
    %p237 = scmp.ne.s32.totalorder %s225, %s226
    %p238 = scmp.eq.s32.totalorder %s22, 1
    %p239 = por %p237, %p238
    %p241 = scmp.ne.s32.totalorder %s226, %s240
    %p242 = scmp.eq.s32.totalorder %s22, 0
    %p243 = por %p241, %p242
    %s244 = ssub.s32 %s16, %s23
    %p245 = scmp.eq.s32.totalorder %s244, 0
    %s247 = sadd.s32 %s246, 1
    %s248 = scalar_select %p245, %s246, %s247
    %p251 = pneg %p245
    %p252 = scmp.eq.s32.totalorder %s16, 1
    %p253 = por %p251, %p252
    %p254 = scmp.ne.s32.totalorder %s246, %s249
    %p255 = scmp.eq.s32.totalorder %s16, 0
    %p256 = por %p254, %p255
    %p257 = scmp.ne.s32.totalorder %s246, %s249
    %p258 = scmp.eq.s32.totalorder %s21, 1
    %p259 = por %p257, %p258
    %p260 = scmp.ne.s32.totalorder %s249, %s250
    %p261 = scmp.eq.s32.totalorder %s21, 0
    %p262 = por %p260, %p261
    %p263 = scmp.ne.s32.totalorder %s249, %s250
    %p264 = scmp.eq.s32.totalorder %s22, 1
    %p265 = por %p263, %p264
    %p267 = scmp.ne.s32.totalorder %s250, %s266
    %p268 = scmp.eq.s32.totalorder %s22, 0
    %p269 = por %p267, %p268
    %p270 = scmp.le.s32.totalorder 1, %s16
    %p271 = scmp.lt.s32.totalorder %s16, 3
    %p272 = pnand %p270, %p271
    %p273 = pneg %p272
    // Predicated region
    $region9: #{transformer_encoder_layer.2} parent=5 // pred_check
      _
    $region10: #{transformer_encoder_layer.2} parent=5 // pred_check_branch
      %275 = sbr.rel (%p272) target = $region12
    $region11: #{transformer_encoder_layer.2} parent=5 // pred_region
      %s276 = ssub.s32 %s16, 1
      // Predicated region
      $region13: #{transformer_encoder_layer.2} parent=11 // pred_check
        %p277 = pneg %p89
      $region14: #{transformer_encoder_layer.2} parent=11 // pred_check_branch
        %279 = sbr.rel (%p277) target = $region16
      $region15: #{transformer_encoder_layer.2} parent=11 // pred_region
        _
      $region16: #{transformer_encoder_layer.2} parent=11 // pred_fallthru
        _
      // Predicated region
      $region17: #{transformer_encoder_layer.2} parent=11 // pred_check
        %p280 = pneg %p110
      $region18: #{transformer_encoder_layer.2} parent=11 // pred_check_branch
        %282 = sbr.rel (%p280) target = $region20
      $region19: #{transformer_encoder_layer.2} parent=11 // pred_region
        _
      $region20: #{transformer_encoder_layer.2} parent=11 // pred_fallthru
        _
      // Predicated region
      $region21: #{transformer_encoder_layer.2} parent=11 // pred_check
        %p283 = pneg %p131
      $region22: #{transformer_encoder_layer.2} parent=11 // pred_check_branch
        %285 = sbr.rel (%p283) target = $region24
      $region23: #{transformer_encoder_layer.2} parent=11 // pred_region
        _
      $region24: #{transformer_encoder_layer.2} parent=11 // pred_fallthru
        _
      // Predicated region
      $region25: #{transformer_encoder_layer.2} parent=11 // pred_check
        %p286 = pneg %p152
      $region26: #{transformer_encoder_layer.2} parent=11 // pred_check_branch
        %288 = sbr.rel (%p286) target = $region28
      $region27: #{transformer_encoder_layer.2} parent=11 // pred_region
        _
      $region28: #{transformer_encoder_layer.2} parent=11 // pred_fallthru
        _
      // Predicated region
      $region29: #{transformer_encoder_layer.2} parent=11 // pred_check
        %p289 = pneg %p173
      $region30: #{transformer_encoder_layer.2} parent=11 // pred_check_branch
        %291 = sbr.rel (%p289) target = $region32
      $region31: #{transformer_encoder_layer.2} parent=11 // pred_region
        _
      $region32: #{transformer_encoder_layer.2} parent=11 // pred_fallthru
        _
      // Predicated region
      $region33: #{transformer_encoder_layer.2} parent=11 // pred_check
        %p292 = pneg %p194
      $region34: #{transformer_encoder_layer.2} parent=11 // pred_check_branch
        %294 = sbr.rel (%p292) target = $region36
      $region35: #{transformer_encoder_layer.2} parent=11 // pred_region
        _
      $region36: #{transformer_encoder_layer.2} parent=11 // pred_fallthru
        _
      // Predicated region
      $region37: #{transformer_encoder_layer.2} parent=11 // pred_check
        %p295 = pneg %p215
      $region38: #{transformer_encoder_layer.2} parent=11 // pred_check_branch
        %297 = sbr.rel (%p295) target = $region40
      $region39: #{transformer_encoder_layer.2} parent=11 // pred_region
        _
      $region40: #{transformer_encoder_layer.2} parent=11 // pred_fallthru
        _
      // Predicated region
      $region41: #{transformer_encoder_layer.2} parent=11 // pred_check
        %p298 = pneg %p236
      $region42: #{transformer_encoder_layer.2} parent=11 // pred_check_branch
        %300 = sbr.rel (%p298) target = $region44
      $region43: #{transformer_encoder_layer.2} parent=11 // pred_region
        _
      $region44: #{transformer_encoder_layer.2} parent=11 // pred_fallthru
        _
    $region12: #{transformer_encoder_layer.2} parent=5 // pred_fallthru
      _
    %p301 = scmp.lt.s32.totalorder %s16, 2
    // Predicated region
    $region45: #{transformer_encoder_layer.2} parent=5 // pred_check
      %p302 = pneg %p301
    $region46: #{transformer_encoder_layer.2} parent=5 // pred_check_branch
      %304 = sbr.rel (%p302) target = $region48
    $region47: #{transformer_encoder_layer.2} parent=5 // pred_region
      // Predicated region
      $region49: #{transformer_encoder_layer.2} parent=47 // pred_check
        %p305 = pneg %p36
      $region50: #{transformer_encoder_layer.2} parent=47 // pred_check_branch
        %307 = sbr.rel (%p305) target = $region52
      $region51: #{transformer_encoder_layer.2} parent=47 // pred_region
        %p308 = scmp.lt.s32.totalorder %s16, 1
        %s309 = scalar_select %p308, %s16, 1
        %s310 = smul.addr %s309, 8
        %s311 = scalar_lea.vmem %s0, %s310
      $region52: #{transformer_encoder_layer.2} parent=47 // pred_fallthru
        _
      // Predicated region
      $region53: #{transformer_encoder_layer.2} parent=47 // pred_check
        %p312 = pneg %p62
      $region54: #{transformer_encoder_layer.2} parent=47 // pred_check_branch
        %314 = sbr.rel (%p312) target = $region56
      $region55: #{transformer_encoder_layer.2} parent=47 // pred_region
        %p315 = scmp.lt.s32.totalorder %s16, 1
        %s316 = scalar_select %p315, %s16, 1
        %s317 = smul.addr %s316, 8
        %s318 = scalar_lea.vmem %s1, %s317
      $region56: #{transformer_encoder_layer.2} parent=47 // pred_fallthru
        _
    $region48: #{transformer_encoder_layer.2} parent=5 // pred_fallthru
      _
    %p319 = scmp.le.s32.totalorder 1, %s16
    %p320 = scmp.lt.s32.totalorder %s16, 3
    %p321 = pnand %p319, %p320
    %p322 = pneg %p321
    // Predicated region
    $region57: #{transformer_encoder_layer.2} parent=5 // pred_check
      _
    $region58: #{transformer_encoder_layer.2} parent=5 // pred_check_branch
      %324 = sbr.rel (%p321) target = $region60
    $region59: #{transformer_encoder_layer.2} parent=5 // pred_region
      %s325 = ssub.s32 %s16, 1
      %p326 = scmp.lt.s32.totalorder %s21, 1
      %s327 = scalar_select %p326, %s21, 1
      %s328 = smul.addr %s327, 8
      %s329 = scalar_lea.vmem %s0, %s328
      %p330 = pneg %p42
      %p331 = pneg %p39
      %p332 = scmp.lt.s32.totalorder %s21, 1
      %s333 = scalar_select %p332, %s21, 1
      %s334 = smul.addr %s333, 8
      %s335 = scalar_lea.vmem %s1, %s334
      %p336 = pneg %p68
      %p337 = pneg %p65
      %p338 = pneg %p89
      %p339 = pneg %p86
      %p340 = pneg %p110
      %p341 = pneg %p107
      %p342 = pneg %p131
      %p343 = pneg %p128
      %p344 = pneg %p152
      %p345 = pneg %p149
      %p346 = pneg %p173
      %p347 = pneg %p170
      %p348 = pneg %p194
      %p349 = pneg %p191
      %p350 = pneg %p215
      %p351 = pneg %p212
      %p352 = pneg %p236
      %p353 = pneg %p233
      %p354 = pneg %p262
      %p355 = pneg %p259
      %p356 = scmp.lt.s32.totalorder %s21, 1
      %s357 = scalar_select %p356, %s21, 1
      %s358 = smul.addr %s357, 8
      %s359 = scalar_lea.vmem %s10, %s358
      %p360 = scmp.lt.s32.totalorder %s21, 1
      %s361 = scalar_select %p360, %s21, 1
      %s362 = smul.addr %s361, 8
      %s363 = scalar_lea.vmem %s0, %s362
      %p364 = scmp.lt.s32.totalorder %s21, 1
      %s365 = scalar_select %p364, %s21, 1
      %s366 = smul.addr %s365, 8
      %s367 = scalar_lea.vmem %s1, %s366
      %p368 = scmp.lt.s32.totalorder %s21, 1
      %s369 = scalar_select %p368, %s21, 1
      %s370 = smul.addr %s369, 8
      %s371 = scalar_lea.vmem %s10, %s370
      %v373 = vld [vmem:[%s363] sm:$0xff]
      %v374 = vld [vmem:[%s367] sm:$0xff]
      %v375 = vadd.f32 %v373, %v374
      %v376 = vpack.c.bf16 %v375, %v375
      %v377 = vld [vmem:[%s2] sm:$0xf]
      %v378 = vld [vmem:[%s2 + $0x4] sm:$0xf]
      %v379 = vld [vmem:[%s2 + $0x8] sm:$0xf]
      %v380 = vld [vmem:[%s2 + $0xc] sm:$0xf]
      %v381 = vld [vmem:[%s3] sm:$0x1]
      %v383 = vlaneseq
      %v384 = vshrl.u32 %v383, 7
      %v385 = vsub.s32 0, %v384
      %v386 = vrot.slane %v381, %v385
      %v392 = vunpack.c.l.b16 %v377
      %v393 = vunpack.c.l.b16 %v378
      %v394 = vunpack.c.l.b16 %v379
      %v395 = vunpack.c.l.b16 %v380
      %v396 = vpack.c.b16 %v393, %v392
      %v397 = vpack.c.b16 %v395, %v394
      %vm400 = vcmask 261120
      %v402 = vsel %vm400, %v376, 0
      %404 = vmatprep.subr.bf16.mxu0 0
      %405 = vmatpush1.bf16.msra.mxu0 0
      %406 = vmatprep.subr.bf16.mxu0 0
      %407 = vmatpush1.bf16.msra.mxu0 0
      %408 = vmatprep.subr.bf16.mxu0 0
      %409 = vmatpush1.bf16.msra.mxu0 0
      %410 = vmatprep.subr.bf16.mxu0 0
      %411 = vmatpush1.bf16.msra.mxu0 0
      %412 = vmatprep.subr.bf16.mxu0 0
      %413 = vmatpush1.bf16.msra.mxu0 0
      %414 = vmatprep.subr.bf16.mxu0 0
      %415 = vmatpush1.bf16.msra.mxu0 0
      %416 = vmatprep.subr.bf16.mxu0 0
      %417 = vmatpush1.bf16.msra.mxu0 %v397
      %418 = vmatprep.subr.bf16.mxu0 0
      %419 = vmatpush1.bf16.msra.mxu0 %v396
      %420 = vmatprep.subr.bf16.mxu0 0
      %421 = vmatpush2.bf16.msra.mxu0 0
      %422 = vmatprep.subr.bf16.mxu0 0
      %423 = vmatpush2.bf16.msra.mxu0 0
      %424 = vmatprep.subr.bf16.mxu0 0
      %425 = vmatpush2.bf16.msra.mxu0 0
      %426 = vmatprep.subr.bf16.mxu0 0
      %427 = vmatpush2.bf16.msra.mxu0 0
      %428 = vmatprep.subr.bf16.mxu0 0
      %429 = vmatpush2.bf16.msra.mxu0 0
      %430 = vmatprep.subr.bf16.mxu0 0
      %431 = vmatpush2.bf16.msra.mxu0 0
      %432 = vmatprep.subr.bf16.mxu0 0
      %433 = vmatpush2.bf16.msra.mxu0 0
      %434 = vmatprep.subr.bf16.mxu0 0
      %435 = vmatpush2.bf16.msra.mxu0 0
      %436 = vmatprep.mubr.bf16.mxu0 0
      %437 = vmatmul.mubr.bf16.gmra.mxu0 %v402
      %v438 = vpop.f32.mrf.mxu0
      %v439 = vadd.f32 %v386, %v438
      %v440 = vpop.f32.mrf.mxu0
      %v441 = vpop.f32.mrf.mxu0
      %v442 = vpop.f32.mrf.mxu0
      %443 = vdwg.mxu0
      %v444 = vpack.c.bf16 %v373, %v373
      %v445 = vld [vmem:[%s4] sm:$0xf]
      %v446 = vld [vmem:[%s4 + $0x4] sm:$0xf]
      %v447 = vld [vmem:[%s4 + $0x8] sm:$0xf]
      %v448 = vld [vmem:[%s4 + $0xc] sm:$0xf]
      %v449 = vld [vmem:[%s5] sm:$0x1]
      %v451 = vlaneseq
      %v452 = vshrl.u32 %v451, 7
      %v453 = vsub.s32 0, %v452
      %v454 = vrot.slane %v449, %v453
      %v460 = vunpack.c.l.b16 %v445
      %v461 = vunpack.c.l.b16 %v446
      %v462 = vunpack.c.l.b16 %v447
      %v463 = vunpack.c.l.b16 %v448
      %v464 = vpack.c.b16 %v461, %v460
      %v465 = vpack.c.b16 %v463, %v462
      %v469 = vsel %vm400, %v444, 0
      %471 = vmatprep.subr.bf16.mxu0 0
      %472 = vmatpush1.bf16.msra.mxu0 0
      %473 = vmatprep.subr.bf16.mxu0 0
      %474 = vmatpush1.bf16.msra.mxu0 0
      %475 = vmatprep.subr.bf16.mxu0 0
      %476 = vmatpush1.bf16.msra.mxu0 0
      %477 = vmatprep.subr.bf16.mxu0 0
      %478 = vmatpush1.bf16.msra.mxu0 0
      %479 = vmatprep.subr.bf16.mxu0 0
      %480 = vmatpush1.bf16.msra.mxu0 0
      %481 = vmatprep.subr.bf16.mxu0 0
      %482 = vmatpush1.bf16.msra.mxu0 0
      %483 = vmatprep.subr.bf16.mxu0 0
      %484 = vmatpush1.bf16.msra.mxu0 %v465
      %485 = vmatprep.subr.bf16.mxu0 0
      %486 = vmatpush1.bf16.msra.mxu0 %v464
      %487 = vmatprep.subr.bf16.mxu0 0
      %488 = vmatpush2.bf16.msra.mxu0 0
      %489 = vmatprep.subr.bf16.mxu0 0
      %490 = vmatpush2.bf16.msra.mxu0 0
      %491 = vmatprep.subr.bf16.mxu0 0
      %492 = vmatpush2.bf16.msra.mxu0 0
      %493 = vmatprep.subr.bf16.mxu0 0
      %494 = vmatpush2.bf16.msra.mxu0 0
      %495 = vmatprep.subr.bf16.mxu0 0
      %496 = vmatpush2.bf16.msra.mxu0 0
      %497 = vmatprep.subr.bf16.mxu0 0
      %498 = vmatpush2.bf16.msra.mxu0 0
      %499 = vmatprep.subr.bf16.mxu0 0
      %500 = vmatpush2.bf16.msra.mxu0 0
      %501 = vmatprep.subr.bf16.mxu0 0
      %502 = vmatpush2.bf16.msra.mxu0 0
      %503 = vmatprep.mubr.bf16.mxu0 0
      %504 = vmatmul.mubr.bf16.gmra.mxu0 %v469
      %v505 = vpop.f32.mrf.mxu0
      %v506 = vadd.f32 %v454, %v505
      %v507 = vpop.f32.mrf.mxu0
      %v508 = vpop.f32.mrf.mxu0
      %v509 = vpop.f32.mrf.mxu0
      %510 = vdwg.mxu0
      %v511 = vmul.f32 %v439, 0.35355338
      %v512 = vpack.c.bf16 %v511, %v511
      %v513 = vpack.c.bf16 %v439, %v439
      %v514 = vpack.c.bf16 %v506, %v506
      %516 = vrot.lane.b32.xlu0 %v513, 96
      %v517 = vpop.permute.xlu0 %516
      %vm518 = vcmask 64512
      %v520 = vsel %vm518, %v512, 0
      %v523 = vsel %vm518, %v517, 0
      %525 = vmatprep.subr.bf16.mxu0 0
      %526 = vmatpush1.bf16.xpose.msra.mxu0 0
      %527 = vmatprep.subr.bf16.mxu0 0
      %528 = vmatpush1.bf16.xpose.msra.mxu0 0
      %529 = vmatprep.subr.bf16.mxu0 0
      %530 = vmatpush1.bf16.xpose.msra.mxu0 0
      %531 = vmatprep.subr.bf16.mxu0 0
      %532 = vmatpush1.bf16.xpose.msra.mxu0 0
      %533 = vmatprep.subr.bf16.mxu0 0
      %534 = vmatpush1.bf16.xpose.msra.mxu0 0
      %535 = vmatprep.subr.bf16.mxu0 0
      %536 = vmatpush1.bf16.xpose.msra.mxu0 0
      %537 = vmatprep.subr.bf16.mxu0 0
      %538 = vmatpush1.bf16.xpose.msra.mxu0 0
      %539 = vmatprep.subr.bf16.mxu0 0
      %540 = vmatpush1.bf16.xpose.msra.mxu0 %v523
      %541 = vmatprep.subr.bf16.mxu0 0
      %542 = vmatpush2.bf16.xpose.msra.mxu0 0
      %543 = vmatprep.subr.bf16.mxu0 0
      %544 = vmatpush2.bf16.xpose.msra.mxu0 0
      %545 = vmatprep.subr.bf16.mxu0 0
      %546 = vmatpush2.bf16.xpose.msra.mxu0 0
      %547 = vmatprep.subr.bf16.mxu0 0
      %548 = vmatpush2.bf16.xpose.msra.mxu0 0
      %549 = vmatprep.subr.bf16.mxu0 0
      %550 = vmatpush2.bf16.xpose.msra.mxu0 0
      %551 = vmatprep.subr.bf16.mxu0 0
      %552 = vmatpush2.bf16.xpose.msra.mxu0 0
      %553 = vmatprep.subr.bf16.mxu0 0
      %554 = vmatpush2.bf16.xpose.msra.mxu0 0
      %555 = vmatprep.subr.bf16.mxu0 0
      %556 = vmatpush2.bf16.xpose.msra.mxu0 0
      %557 = vmatprep.mubr.bf16.mxu0 0
      %558 = vmatmul.mubr.bf16.gmra.mxu0 %v520
      %v559 = vpop.f32.mrf.mxu0
      %v560 = vadd.f32 0.0, %v559
      %v561 = vpop.f32.mrf.mxu0
      %v562 = vpop.f32.mrf.mxu0
      %v563 = vpop.f32.mrf.mxu0
      %564 = vdwg.mxu0
      %v565 = vsel %vm518, %v560, -inf
      %566 = vmax.xlane.f32.xlu0 %v565
      %v567 = vpop.xlane.xlu0 %566
      %v568 = vsub.f32 %v560, %v567
      %v569 = vmul.f32 %v568, 1.442695
      %v570 = vpow.pop %v569
      %v571 = vsel %vm518, %v570, 0.0
      %572 = vadd.xlane.f32.xlu0 %v571
      %v573 = vpop.xlane.xlu0 %572
      %v574 = vrcp.pop %v573
      %v575 = vmul.f32 %v570, %v574
      %v576 = vpack.c.bf16 %v575, %v575
      %v578 = vsel %vm518, %v576, 0
      %vm580 = vcmask 1043456
      %v582 = vsel %vm580, %v514, 0
      %584 = vmatprep.subr.bf16.mxu0 0
      %585 = vmatpush1.bf16.msra.mxu0 0
      %586 = vmatprep.subr.bf16.mxu0 0
      %587 = vmatpush1.bf16.msra.mxu0 0
      %588 = vmatprep.subr.bf16.mxu0 0
      %589 = vmatpush1.bf16.msra.mxu0 0
      %590 = vmatprep.subr.bf16.mxu0 0
      %591 = vmatpush1.bf16.msra.mxu0 0
      %592 = vmatprep.subr.bf16.mxu0 0
      %593 = vmatpush1.bf16.msra.mxu0 0
      %594 = vmatprep.subr.bf16.mxu0 0
      %595 = vmatpush1.bf16.msra.mxu0 0
      %596 = vmatprep.subr.bf16.mxu0 0
      %597 = vmatpush1.bf16.msra.mxu0 0
      %598 = vmatprep.subr.bf16.mxu0 0
      %599 = vmatpush1.bf16.msra.mxu0 %v582
      %600 = vmatprep.subr.bf16.mxu0 0
      %601 = vmatpush2.bf16.msra.mxu0 0
      %602 = vmatprep.subr.bf16.mxu0 0
      %603 = vmatpush2.bf16.msra.mxu0 0
      %604 = vmatprep.subr.bf16.mxu0 0
      %605 = vmatpush2.bf16.msra.mxu0 0
      %606 = vmatprep.subr.bf16.mxu0 0
      %607 = vmatpush2.bf16.msra.mxu0 0
      %608 = vmatprep.subr.bf16.mxu0 0
      %609 = vmatpush2.bf16.msra.mxu0 0
      %610 = vmatprep.subr.bf16.mxu0 0
      %611 = vmatpush2.bf16.msra.mxu0 0
      %612 = vmatprep.subr.bf16.mxu0 0
      %613 = vmatpush2.bf16.msra.mxu0 0
      %614 = vmatprep.subr.bf16.mxu0 0
      %615 = vmatpush2.bf16.msra.mxu0 0
      %616 = vmatprep.mubr.bf16.mxu0 0
      %617 = vmatmul.mubr.bf16.gmra.mxu0 %v578
      %v618 = vpop.f32.mrf.mxu0
      %v619 = vadd.f32 0.0, %v618
      %v620 = vpop.f32.mrf.mxu0
      %v621 = vpop.f32.mrf.mxu0
      %v622 = vpop.f32.mrf.mxu0
      %623 = vdwg.mxu0
      %625 = vrot.lane.b32.xlu0 %v512, 120
      %v626 = vpop.permute.xlu0 %625
      %627 = vrot.lane.b32.xlu0 %v513, 88
      %v628 = vpop.permute.xlu0 %627
      %v630 = vsel %vm518, %v626, 0
      %v633 = vsel %vm518, %v628, 0
      %635 = vmatprep.subr.bf16.mxu0 0
      %636 = vmatpush1.bf16.xpose.msra.mxu0 0
      %637 = vmatprep.subr.bf16.mxu0 0
      %638 = vmatpush1.bf16.xpose.msra.mxu0 0
      %639 = vmatprep.subr.bf16.mxu0 0
      %640 = vmatpush1.bf16.xpose.msra.mxu0 0
      %641 = vmatprep.subr.bf16.mxu0 0
      %642 = vmatpush1.bf16.xpose.msra.mxu0 0
      %643 = vmatprep.subr.bf16.mxu0 0
      %644 = vmatpush1.bf16.xpose.msra.mxu0 0
      %645 = vmatprep.subr.bf16.mxu0 0
      %646 = vmatpush1.bf16.xpose.msra.mxu0 0
      %647 = vmatprep.subr.bf16.mxu0 0
      %648 = vmatpush1.bf16.xpose.msra.mxu0 0
      %649 = vmatprep.subr.bf16.mxu0 0
      %650 = vmatpush1.bf16.xpose.msra.mxu0 %v633
      %651 = vmatprep.subr.bf16.mxu0 0
      %652 = vmatpush2.bf16.xpose.msra.mxu0 0
      %653 = vmatprep.subr.bf16.mxu0 0
      %654 = vmatpush2.bf16.xpose.msra.mxu0 0
      %655 = vmatprep.subr.bf16.mxu0 0
      %656 = vmatpush2.bf16.xpose.msra.mxu0 0
      %657 = vmatprep.subr.bf16.mxu0 0
      %658 = vmatpush2.bf16.xpose.msra.mxu0 0
      %659 = vmatprep.subr.bf16.mxu0 0
      %660 = vmatpush2.bf16.xpose.msra.mxu0 0
      %661 = vmatprep.subr.bf16.mxu0 0
      %662 = vmatpush2.bf16.xpose.msra.mxu0 0
      %663 = vmatprep.subr.bf16.mxu0 0
      %664 = vmatpush2.bf16.xpose.msra.mxu0 0
      %665 = vmatprep.subr.bf16.mxu0 0
      %666 = vmatpush2.bf16.xpose.msra.mxu0 0
      %667 = vmatprep.mubr.bf16.mxu0 0
      %668 = vmatmul.mubr.bf16.gmra.mxu0 %v630
      %v669 = vpop.f32.mrf.mxu0
      %v670 = vadd.f32 0.0, %v669
      %v671 = vpop.f32.mrf.mxu0
      %v672 = vpop.f32.mrf.mxu0
      %v673 = vpop.f32.mrf.mxu0
      %674 = vdwg.mxu0
      %v675 = vsel %vm518, %v670, -inf
      %676 = vmax.xlane.f32.xlu0 %v675
      %v677 = vpop.xlane.xlu0 %676
      %v678 = vsub.f32 %v670, %v677
      %v679 = vmul.f32 %v678, 1.442695
      %v680 = vpow.pop %v679
      %v681 = vsel %vm518, %v680, 0.0
      %682 = vadd.xlane.f32.xlu0 %v681
      %v683 = vpop.xlane.xlu0 %682
      %v684 = vrcp.pop %v683
      %v685 = vmul.f32 %v680, %v684
      %v686 = vpack.c.bf16 %v685, %v685
      %688 = vrot.lane.b32.xlu0 %v514, 120
      %v689 = vpop.permute.xlu0 %688
      %v691 = vsel %vm518, %v686, 0
      %v694 = vsel %vm580, %v689, 0
      %696 = vmatprep.subr.bf16.mxu0 0
      %697 = vmatpush1.bf16.msra.mxu0 0
      %698 = vmatprep.subr.bf16.mxu0 0
      %699 = vmatpush1.bf16.msra.mxu0 0
      %700 = vmatprep.subr.bf16.mxu0 0
      %701 = vmatpush1.bf16.msra.mxu0 0
      %702 = vmatprep.subr.bf16.mxu0 0
      %703 = vmatpush1.bf16.msra.mxu0 0
      %704 = vmatprep.subr.bf16.mxu0 0
      %705 = vmatpush1.bf16.msra.mxu0 0
      %706 = vmatprep.subr.bf16.mxu0 0
      %707 = vmatpush1.bf16.msra.mxu0 0
      %708 = vmatprep.subr.bf16.mxu0 0
      %709 = vmatpush1.bf16.msra.mxu0 0
      %710 = vmatprep.subr.bf16.mxu0 0
      %711 = vmatpush1.bf16.msra.mxu0 %v694
      %712 = vmatprep.subr.bf16.mxu0 0
      %713 = vmatpush2.bf16.msra.mxu0 0
      %714 = vmatprep.subr.bf16.mxu0 0
      %715 = vmatpush2.bf16.msra.mxu0 0
      %716 = vmatprep.subr.bf16.mxu0 0
      %717 = vmatpush2.bf16.msra.mxu0 0
      %718 = vmatprep.subr.bf16.mxu0 0
      %719 = vmatpush2.bf16.msra.mxu0 0
      %720 = vmatprep.subr.bf16.mxu0 0
      %721 = vmatpush2.bf16.msra.mxu0 0
      %722 = vmatprep.subr.bf16.mxu0 0
      %723 = vmatpush2.bf16.msra.mxu0 0
      %724 = vmatprep.subr.bf16.mxu0 0
      %725 = vmatpush2.bf16.msra.mxu0 0
      %726 = vmatprep.subr.bf16.mxu0 0
      %727 = vmatpush2.bf16.msra.mxu0 0
      %728 = vmatprep.mubr.bf16.mxu0 0
      %729 = vmatmul.mubr.bf16.gmra.mxu0 %v691
      %v730 = vpop.f32.mrf.mxu0
      %v731 = vadd.f32 0.0, %v730
      %v732 = vpop.f32.mrf.mxu0
      %v733 = vpop.f32.mrf.mxu0
      %v734 = vpop.f32.mrf.mxu0
      %735 = vdwg.mxu0
      %736 = vrot.lane.b32.xlu0 %v512, 112
      %v737 = vpop.permute.xlu0 %736
      %738 = vrot.lane.b32.xlu0 %v513, 80
      %v739 = vpop.permute.xlu0 %738
      %v741 = vsel %vm518, %v737, 0
      %v744 = vsel %vm518, %v739, 0
      %746 = vmatprep.subr.bf16.mxu0 0
      %747 = vmatpush1.bf16.xpose.msra.mxu0 0
      %748 = vmatprep.subr.bf16.mxu0 0
      %749 = vmatpush1.bf16.xpose.msra.mxu0 0
      %750 = vmatprep.subr.bf16.mxu0 0
      %751 = vmatpush1.bf16.xpose.msra.mxu0 0
      %752 = vmatprep.subr.bf16.mxu0 0
      %753 = vmatpush1.bf16.xpose.msra.mxu0 0
      %754 = vmatprep.subr.bf16.mxu0 0
      %755 = vmatpush1.bf16.xpose.msra.mxu0 0
      %756 = vmatprep.subr.bf16.mxu0 0
      %757 = vmatpush1.bf16.xpose.msra.mxu0 0
      %758 = vmatprep.subr.bf16.mxu0 0
      %759 = vmatpush1.bf16.xpose.msra.mxu0 0
      %760 = vmatprep.subr.bf16.mxu0 0
      %761 = vmatpush1.bf16.xpose.msra.mxu0 %v744
      %762 = vmatprep.subr.bf16.mxu0 0
      %763 = vmatpush2.bf16.xpose.msra.mxu0 0
      %764 = vmatprep.subr.bf16.mxu0 0
      %765 = vmatpush2.bf16.xpose.msra.mxu0 0
      %766 = vmatprep.subr.bf16.mxu0 0
      %767 = vmatpush2.bf16.xpose.msra.mxu0 0
      %768 = vmatprep.subr.bf16.mxu0 0
      %769 = vmatpush2.bf16.xpose.msra.mxu0 0
      %770 = vmatprep.subr.bf16.mxu0 0
      %771 = vmatpush2.bf16.xpose.msra.mxu0 0
      %772 = vmatprep.subr.bf16.mxu0 0
      %773 = vmatpush2.bf16.xpose.msra.mxu0 0
      %774 = vmatprep.subr.bf16.mxu0 0
      %775 = vmatpush2.bf16.xpose.msra.mxu0 0
      %776 = vmatprep.subr.bf16.mxu0 0
      %777 = vmatpush2.bf16.xpose.msra.mxu0 0
      %778 = vmatprep.mubr.bf16.mxu0 0
      %779 = vmatmul.mubr.bf16.gmra.mxu0 %v741
      %v780 = vpop.f32.mrf.mxu0
      %v781 = vadd.f32 0.0, %v780
      %v782 = vpop.f32.mrf.mxu0
      %v783 = vpop.f32.mrf.mxu0
      %v784 = vpop.f32.mrf.mxu0
      %785 = vdwg.mxu0
      %v786 = vsel %vm518, %v781, -inf
      %787 = vmax.xlane.f32.xlu0 %v786
      %v788 = vpop.xlane.xlu0 %787
      %v789 = vsub.f32 %v781, %v788
      %v790 = vmul.f32 %v789, 1.442695
      %v791 = vpow.pop %v790
      %v792 = vsel %vm518, %v791, 0.0
      %793 = vadd.xlane.f32.xlu0 %v792
      %v794 = vpop.xlane.xlu0 %793
      %v795 = vrcp.pop %v794
      %v796 = vmul.f32 %v791, %v795
      %v797 = vpack.c.bf16 %v796, %v796
      %798 = vrot.lane.b32.xlu0 %v514, 112
      %v799 = vpop.permute.xlu0 %798
      %v801 = vsel %vm518, %v797, 0
      %v804 = vsel %vm580, %v799, 0
      %806 = vmatprep.subr.bf16.mxu0 0
      %807 = vmatpush1.bf16.msra.mxu0 0
      %808 = vmatprep.subr.bf16.mxu0 0
      %809 = vmatpush1.bf16.msra.mxu0 0
      %810 = vmatprep.subr.bf16.mxu0 0
      %811 = vmatpush1.bf16.msra.mxu0 0
      %812 = vmatprep.subr.bf16.mxu0 0
      %813 = vmatpush1.bf16.msra.mxu0 0
      %814 = vmatprep.subr.bf16.mxu0 0
      %815 = vmatpush1.bf16.msra.mxu0 0
      %816 = vmatprep.subr.bf16.mxu0 0
      %817 = vmatpush1.bf16.msra.mxu0 0
      %818 = vmatprep.subr.bf16.mxu0 0
      %819 = vmatpush1.bf16.msra.mxu0 0
      %820 = vmatprep.subr.bf16.mxu0 0
      %821 = vmatpush1.bf16.msra.mxu0 %v804
      %822 = vmatprep.subr.bf16.mxu0 0
      %823 = vmatpush2.bf16.msra.mxu0 0
      %824 = vmatprep.subr.bf16.mxu0 0
      %825 = vmatpush2.bf16.msra.mxu0 0
      %826 = vmatprep.subr.bf16.mxu0 0
      %827 = vmatpush2.bf16.msra.mxu0 0
      %828 = vmatprep.subr.bf16.mxu0 0
      %829 = vmatpush2.bf16.msra.mxu0 0
      %830 = vmatprep.subr.bf16.mxu0 0
      %831 = vmatpush2.bf16.msra.mxu0 0
      %832 = vmatprep.subr.bf16.mxu0 0
      %833 = vmatpush2.bf16.msra.mxu0 0
      %834 = vmatprep.subr.bf16.mxu0 0
      %835 = vmatpush2.bf16.msra.mxu0 0
      %836 = vmatprep.subr.bf16.mxu0 0
      %837 = vmatpush2.bf16.msra.mxu0 0
      %838 = vmatprep.mubr.bf16.mxu0 0
      %839 = vmatmul.mubr.bf16.gmra.mxu0 %v801
      %v840 = vpop.f32.mrf.mxu0
      %v841 = vadd.f32 0.0, %v840
      %v842 = vpop.f32.mrf.mxu0
      %v843 = vpop.f32.mrf.mxu0
      %v844 = vpop.f32.mrf.mxu0
      %845 = vdwg.mxu0
      %846 = vrot.lane.b32.xlu0 %v512, 104
      %v847 = vpop.permute.xlu0 %846
      %848 = vrot.lane.b32.xlu0 %v513, 72
      %v849 = vpop.permute.xlu0 %848
      %v851 = vsel %vm518, %v847, 0
      %v854 = vsel %vm518, %v849, 0
      %856 = vmatprep.subr.bf16.mxu0 0
      %857 = vmatpush1.bf16.xpose.msra.mxu0 0
      %858 = vmatprep.subr.bf16.mxu0 0
      %859 = vmatpush1.bf16.xpose.msra.mxu0 0
      %860 = vmatprep.subr.bf16.mxu0 0
      %861 = vmatpush1.bf16.xpose.msra.mxu0 0
      %862 = vmatprep.subr.bf16.mxu0 0
      %863 = vmatpush1.bf16.xpose.msra.mxu0 0
      %864 = vmatprep.subr.bf16.mxu0 0
      %865 = vmatpush1.bf16.xpose.msra.mxu0 0
      %866 = vmatprep.subr.bf16.mxu0 0
      %867 = vmatpush1.bf16.xpose.msra.mxu0 0
      %868 = vmatprep.subr.bf16.mxu0 0
      %869 = vmatpush1.bf16.xpose.msra.mxu0 0
      %870 = vmatprep.subr.bf16.mxu0 0
      %871 = vmatpush1.bf16.xpose.msra.mxu0 %v854
      %872 = vmatprep.subr.bf16.mxu0 0
      %873 = vmatpush2.bf16.xpose.msra.mxu0 0
      %874 = vmatprep.subr.bf16.mxu0 0
      %875 = vmatpush2.bf16.xpose.msra.mxu0 0
      %876 = vmatprep.subr.bf16.mxu0 0
      %877 = vmatpush2.bf16.xpose.msra.mxu0 0
      %878 = vmatprep.subr.bf16.mxu0 0
      %879 = vmatpush2.bf16.xpose.msra.mxu0 0
      %880 = vmatprep.subr.bf16.mxu0 0
      %881 = vmatpush2.bf16.xpose.msra.mxu0 0
      %882 = vmatprep.subr.bf16.mxu0 0
      %883 = vmatpush2.bf16.xpose.msra.mxu0 0
      %884 = vmatprep.subr.bf16.mxu0 0
      %885 = vmatpush2.bf16.xpose.msra.mxu0 0
      %886 = vmatprep.subr.bf16.mxu0 0
      %887 = vmatpush2.bf16.xpose.msra.mxu0 0
      %888 = vmatprep.mubr.bf16.mxu0 0
      %889 = vmatmul.mubr.bf16.gmra.mxu0 %v851
      %v890 = vpop.f32.mrf.mxu0
      %v891 = vadd.f32 0.0, %v890
      %v892 = vpop.f32.mrf.mxu0
      %v893 = vpop.f32.mrf.mxu0
      %v894 = vpop.f32.mrf.mxu0
      %895 = vdwg.mxu0
      %v896 = vsel %vm518, %v891, -inf
      %897 = vmax.xlane.f32.xlu0 %v896
      %v898 = vpop.xlane.xlu0 %897
      %v899 = vsub.f32 %v891, %v898
      %v900 = vmul.f32 %v899, 1.442695
      %v901 = vpow.pop %v900
      %v902 = vsel %vm518, %v901, 0.0
      %903 = vadd.xlane.f32.xlu0 %v902
      %v904 = vpop.xlane.xlu0 %903
      %v905 = vrcp.pop %v904
      %v906 = vmul.f32 %v901, %v905
      %v907 = vpack.c.bf16 %v906, %v906
      %908 = vrot.lane.b32.xlu0 %v514, 104
      %v909 = vpop.permute.xlu0 %908
      %v911 = vsel %vm518, %v907, 0
      %v914 = vsel %vm580, %v909, 0
      %916 = vmatprep.subr.bf16.mxu0 0
      %917 = vmatpush1.bf16.msra.mxu0 0
      %918 = vmatprep.subr.bf16.mxu0 0
      %919 = vmatpush1.bf16.msra.mxu0 0
      %920 = vmatprep.subr.bf16.mxu0 0
      %921 = vmatpush1.bf16.msra.mxu0 0
      %922 = vmatprep.subr.bf16.mxu0 0
      %923 = vmatpush1.bf16.msra.mxu0 0
      %924 = vmatprep.subr.bf16.mxu0 0
      %925 = vmatpush1.bf16.msra.mxu0 0
      %926 = vmatprep.subr.bf16.mxu0 0
      %927 = vmatpush1.bf16.msra.mxu0 0
      %928 = vmatprep.subr.bf16.mxu0 0
      %929 = vmatpush1.bf16.msra.mxu0 0
      %930 = vmatprep.subr.bf16.mxu0 0
      %931 = vmatpush1.bf16.msra.mxu0 %v914
      %932 = vmatprep.subr.bf16.mxu0 0
      %933 = vmatpush2.bf16.msra.mxu0 0
      %934 = vmatprep.subr.bf16.mxu0 0
      %935 = vmatpush2.bf16.msra.mxu0 0
      %936 = vmatprep.subr.bf16.mxu0 0
      %937 = vmatpush2.bf16.msra.mxu0 0
      %938 = vmatprep.subr.bf16.mxu0 0
      %939 = vmatpush2.bf16.msra.mxu0 0
      %940 = vmatprep.subr.bf16.mxu0 0
      %941 = vmatpush2.bf16.msra.mxu0 0
      %942 = vmatprep.subr.bf16.mxu0 0
      %943 = vmatpush2.bf16.msra.mxu0 0
      %944 = vmatprep.subr.bf16.mxu0 0
      %945 = vmatpush2.bf16.msra.mxu0 0
      %946 = vmatprep.subr.bf16.mxu0 0
      %947 = vmatpush2.bf16.msra.mxu0 0
      %948 = vmatprep.mubr.bf16.mxu0 0
      %949 = vmatmul.mubr.bf16.gmra.mxu0 %v911
      %v950 = vpop.f32.mrf.mxu0
      %v951 = vadd.f32 0.0, %v950
      %v952 = vpop.f32.mrf.mxu0
      %v953 = vpop.f32.mrf.mxu0
      %v954 = vpop.f32.mrf.mxu0
      %955 = vdwg.mxu0
      %957 = vrot.lane.b32.xlu0 %v731, 8
      %v958 = vpop.permute.xlu0 %957
      %961 = vrot.lane.b32.xlu0 %v841, 16
      %v962 = vpop.permute.xlu0 %961
      %965 = vrot.lane.b32.xlu0 %v951, 24
      %v966 = vpop.permute.xlu0 %965
      %v968 = vsel %vm518, %v619, %v958
      %vm969 = vcmask 130048
      %v970 = vsel %vm969, %v968, %v962
      %vm971 = vcmask 195584
      %v972 = vsel %vm971, %v970, %v966
      %v973 = vpack.c.bf16 %v972, %v972
      %v974 = vld [vmem:[%s6] sm:$0xf]
      %v975 = vld [vmem:[%s6 + $0x4] sm:$0xf]
      %v976 = vld [vmem:[%s6 + $0x8] sm:$0xf]
      %v977 = vld [vmem:[%s6 + $0xc] sm:$0xf]
      %v978 = vld [vmem:[%s7] sm:$0x1]
      %v980 = vlaneseq
      %v981 = vshrl.u32 %v980, 7
      %v982 = vsub.s32 0, %v981
      %v983 = vrot.slane %v978, %v982
      %v989 = vunpack.c.l.b16 %v974
      %v990 = vunpack.c.l.b16 %v975
      %v991 = vunpack.c.l.b16 %v976
      %v992 = vunpack.c.l.b16 %v977
      %v993 = vpack.c.b16 %v990, %v989
      %v994 = vpack.c.b16 %v992, %v991
      %v998 = vsel %vm400, %v973, 0
      %1000 = vmatprep.subr.bf16.mxu0 0
      %1001 = vmatpush1.bf16.msra.mxu0 0
      %1002 = vmatprep.subr.bf16.mxu0 0
      %1003 = vmatpush1.bf16.msra.mxu0 0
      %1004 = vmatprep.subr.bf16.mxu0 0
      %1005 = vmatpush1.bf16.msra.mxu0 0
      %1006 = vmatprep.subr.bf16.mxu0 0
      %1007 = vmatpush1.bf16.msra.mxu0 0
      %1008 = vmatprep.subr.bf16.mxu0 0
      %1009 = vmatpush1.bf16.msra.mxu0 0
      %1010 = vmatprep.subr.bf16.mxu0 0
      %1011 = vmatpush1.bf16.msra.mxu0 0
      %1012 = vmatprep.subr.bf16.mxu0 0
      %1013 = vmatpush1.bf16.msra.mxu0 %v994
      %1014 = vmatprep.subr.bf16.mxu0 0
      %1015 = vmatpush1.bf16.msra.mxu0 %v993
      %1016 = vmatprep.subr.bf16.mxu0 0
      %1017 = vmatpush2.bf16.msra.mxu0 0
      %1018 = vmatprep.subr.bf16.mxu0 0
      %1019 = vmatpush2.bf16.msra.mxu0 0
      %1020 = vmatprep.subr.bf16.mxu0 0
      %1021 = vmatpush2.bf16.msra.mxu0 0
      %1022 = vmatprep.subr.bf16.mxu0 0
      %1023 = vmatpush2.bf16.msra.mxu0 0
      %1024 = vmatprep.subr.bf16.mxu0 0
      %1025 = vmatpush2.bf16.msra.mxu0 0
      %1026 = vmatprep.subr.bf16.mxu0 0
      %1027 = vmatpush2.bf16.msra.mxu0 0
      %1028 = vmatprep.subr.bf16.mxu0 0
      %1029 = vmatpush2.bf16.msra.mxu0 0
      %1030 = vmatprep.subr.bf16.mxu0 0
      %1031 = vmatpush2.bf16.msra.mxu0 0
      %1032 = vmatprep.mubr.bf16.mxu0 0
      %1033 = vmatmul.mubr.bf16.gmra.mxu0 %v998
      %v1034 = vpop.f32.mrf.mxu0
      %v1035 = vadd.f32 %v983, %v1034
      %v1036 = vpop.f32.mrf.mxu0
      %v1037 = vpop.f32.mrf.mxu0
      %v1038 = vpop.f32.mrf.mxu0
      %1039 = vdwg.mxu0
      %v1040 = vsel %vm400, %v1035, 0.0
      %1041 = vadd.xlane.f32.xlu0 %v1040
      %v1042 = vpop.xlane.xlu0 %1041
      %v1043 = vrcp.pop 32.0
      %v1044 = vmul.f32 %v1042, %v1043
      %v1045 = vsub.f32 %v1035, %v1044
      %v1046 = vmul.f32 %v1045, %v1045
      %v1047 = vsel %vm400, %v1046, 0.0
      %1048 = vadd.xlane.f32.xlu0 %v1047
      %v1049 = vpop.xlane.xlu0 %1048
      %v1050 = vmul.f32 %v1049, %v1043
      %v1051 = vadd.f32 %v1050, 1e-05
      %v1052 = vrsqrt.pop %v1051
      %v1053 = vmul.f32 %v1045, %v1052
      %v1054 = vld [vmem:[%s8] sm:$0x1]
      %v1056 = vlaneseq
      %v1057 = vshrl.u32 %v1056, 7
      %v1058 = vsub.s32 0, %v1057
      %v1059 = vrot.slane %v1054, %v1058
      %v1061 = vmul.f32 %v1053, %v1059
      %v1062 = vld [vmem:[%s9] sm:$0x1]
      %v1064 = vlaneseq
      %v1065 = vshrl.u32 %v1064, 7
      %v1066 = vsub.s32 0, %v1065
      %v1067 = vrot.slane %v1062, %v1066
      %v1069 = vadd.f32 %v1061, %v1067
      %1070 = vst.msk [vmem:[%s371] sm:$0xff] %vm400, %v1069
      %p1071 = scmp.lt.s32.totalorder %s21, 1
      %s1072 = scalar_select %p1071, %s21, 1
      %s1073 = smul.addr %s1072, 8
      %s1074 = scalar_lea.vmem %s10, %s1073
      // Predicated region
      $region61: #{transformer_encoder_layer.2} parent=59 // pred_check
        %p1075 = pneg %p259
      $region62: #{transformer_encoder_layer.2} parent=59 // pred_check_branch
        %1077 = sbr.rel (%p1075) target = $region64
      $region63: #{transformer_encoder_layer.2} parent=59 // pred_region
        _
      $region64: #{transformer_encoder_layer.2} parent=59 // pred_fallthru
        _
    $region60: #{transformer_encoder_layer.2} parent=5 // pred_fallthru
      _
    %p1078 = scmp.le.s32.totalorder 2, %s16
    // Predicated region
    $region65: #{transformer_encoder_layer.2} parent=5 // pred_check
      %p1079 = pneg %p1078
    $region66: #{transformer_encoder_layer.2} parent=5 // pred_check_branch
      %1081 = sbr.rel (%p1079) target = $region68
    $region67: #{transformer_encoder_layer.2} parent=5 // pred_region
      %s1082 = ssub.s32 %s16, 2
      // Predicated region
      $region69: #{transformer_encoder_layer.2} parent=67 // pred_check
        %p1083 = pneg %p265
      $region70: #{transformer_encoder_layer.2} parent=67 // pred_check_branch
        %1085 = sbr.rel (%p1083) target = $region72
      $region71: #{transformer_encoder_layer.2} parent=67 // pred_region
        %p1086 = scmp.lt.s32.totalorder %s22, 1
        %s1087 = scalar_select %p1086, %s22, 1
        %s1088 = smul.addr %s1087, 8
        %s1089 = scalar_lea.vmem %s10, %s1088
      $region72: #{transformer_encoder_layer.2} parent=67 // pred_fallthru
        _
    $region68: #{transformer_encoder_layer.2} parent=5 // pred_fallthru
      _
  $region6: #{transformer_encoder_layer.2} parent=0 // loop_footer
    %s20 = sadd.s32 1, %s16
  $region7: #{transformer_encoder_layer.2} parent=0 // loop_footer_branch
    %15 = sbr.rel target = $region3
  $region8: #{transformer_encoder_layer.2} parent=0 // loop_exit
    _

</llo_original>
